<compile_context>
chip_gen: v5e
topology: v5e:2x2
jax: 0.10.0
libtpu: 0.0.40
codegen_flags: <defaults>
</compile_context>

<pallas_src>
import jax
import jax.numpy as jnp
from jax import lax
from jax.experimental import pallas as pl
from jax.experimental.pallas import tpu as pltpu
import numpy as np


def _make_fused_kernel(T, B, I, H):
    """Fused encoder+decoder kernel, specialized to static shapes.

    Ref layout (time-major rows collapsed into sublanes):
      x_ref     : (T*B, I)    full input sequence
      wih_e_ref : (I, 4H)     encoder input->gates weights (transposed)
      whh_e_ref : (H, 4H)     encoder hidden->gates weights (transposed)
      b_e_ref   : (1, 4H)     encoder bias_ih + bias_hh
      wih_d_ref : (H, 4I)     decoder input->gates weights (transposed)
      whh_d_ref : (I, 4I)     decoder hidden->gates weights (transposed)
      b_d_ref   : (1, 4I)     decoder bias_ih + bias_hh
      out_ref   : (T*B, I)    decoder hidden states for every timestep
      xg_ref    : (T*B, 4H)   scratch: hoisted encoder input gates
      he_ref    : (T*B, H)    scratch: encoder hidden states (never leaves VMEM)
      dg_ref    : (T*B, 4I)   scratch: hoisted decoder input gates
    """
    unroll = min(T, 8)

    def lstm_cell(gates, c_prev, n):
        # PyTorch gate order: input, forget, cell(g), output.
        i_g = jax.nn.sigmoid(gates[:, 0 * n:1 * n])
        f_g = jax.nn.sigmoid(gates[:, 1 * n:2 * n])
        g_g = jnp.tanh(gates[:, 2 * n:3 * n])
        o_g = jax.nn.sigmoid(gates[:, 3 * n:4 * n])
        c_t = f_g * c_prev + i_g * g_g
        h_t = o_g * jnp.tanh(c_t)
        return h_t, c_t

    def kernel(x_ref, wih_e_ref, whh_e_ref, b_e_ref,
               wih_d_ref, whh_d_ref, b_d_ref,
               out_ref, xg_ref, he_ref, dg_ref):
        # (1) Hoisted encoder input projection for the whole sequence: one
        # well-shaped (T*B, I) x (I, 4H) MXU matmul; encoder bias folded in.
        xg_ref[...] = (
            jnp.dot(x_ref[...], wih_e_ref[...],
                    preferred_element_type=jnp.float32)
            + b_e_ref[...]
        )

        # (2) Encoder recurrence: only h @ W_hh_e remains on the serial path.
        def enc_step(t, carry):
            h, c = carry
            row = pl.multiple_of(t * B, B)
            gates = xg_ref[pl.ds(row, B), :] + jnp.dot(
                h, whh_e_ref[...], preferred_element_type=jnp.float32)
            h, c = lstm_cell(gates, c, H)
            he_ref[pl.ds(row, B), :] = h
            return h, c

        lax.fori_loop(
            0, T, enc_step,
            (jnp.zeros((B, H), jnp.float32), jnp.zeros((B, H), jnp.float32)),
            unroll=unroll)

        # (3) Hoisted decoder input projection over the full encoded sequence:
        # one (T*B, H) x (H, 4I) MXU matmul; decoder bias folded in.
        dg_ref[...] = (
            jnp.dot(he_ref[...], wih_d_ref[...],
                    preferred_element_type=jnp.float32)
            + b_d_ref[...]
        )

        # (4) Decoder recurrence: only h @ W_hh_d remains on the serial path.
        def dec_step(t, carry):
            h, c = carry
            row = pl.multiple_of(t * B, B)
            gates = dg_ref[pl.ds(row, B), :] + jnp.dot(
                h, whh_d_ref[...], preferred_element_type=jnp.float32)
            h, c = lstm_cell(gates, c, I)
            out_ref[pl.ds(row, B), :] = h
            return h, c

        lax.fori_loop(
            0, T, dec_step,
            (jnp.zeros((B, I), jnp.float32), jnp.zeros((B, I), jnp.float32)),
            unroll=unroll)

    return kernel


def aed_shakespear_forward(x_bti, enc_params, dec_params):
    """Full module forward: x (B, T, input_size) -> decoded (B, T, input_size)."""
    w_ih_e, w_hh_e, b_e = enc_params   # (I,4H), (H,4H), (1,4H)
    w_ih_d, w_hh_d, b_d = dec_params   # (H,4I), (I,4I), (1,4I)
    B, T, I = x_bti.shape
    H = w_hh_e.shape[0]

    # Pad batch to the f32 sublane count (8).  LSTM batch rows are independent,
    # so zero rows are harmless and are sliced away below.
    Bp = max(8, ((B + 7) // 8) * 8)
    x_tbi = jnp.transpose(x_bti, (1, 0, 2))                 # (T, B, I)
    if Bp != B:
        x_tbi = jnp.pad(x_tbi, ((0, 0), (0, Bp - B), (0, 0)))
    x_2d = x_tbi.reshape(T * Bp, I)                         # row-major collapse

    kernel = _make_fused_kernel(T, Bp, I, H)

    out_2d = pl.pallas_call(
        kernel,
        out_shape=jax.ShapeDtypeStruct((T * Bp, I), jnp.float32),
        grid_spec=pltpu.PrefetchScalarGridSpec(
            num_scalar_prefetch=0,
            grid=(1,),
            in_specs=[
                pl.BlockSpec((T * Bp, I), lambda i: (0, 0)),
                pl.BlockSpec((I, 4 * H), lambda i: (0, 0)),
                pl.BlockSpec((H, 4 * H), lambda i: (0, 0)),
                pl.BlockSpec((1, 4 * H), lambda i: (0, 0)),
                pl.BlockSpec((H, 4 * I), lambda i: (0, 0)),
                pl.BlockSpec((I, 4 * I), lambda i: (0, 0)),
                pl.BlockSpec((1, 4 * I), lambda i: (0, 0)),
            ],
            out_specs=pl.BlockSpec((T * Bp, I), lambda i: (0, 0)),
            scratch_shapes=[
                pltpu.VMEM((T * Bp, 4 * H), jnp.float32),   # encoder input gates
                pltpu.VMEM((T * Bp, H), jnp.float32),       # encoder hidden states
                pltpu.VMEM((T * Bp, 4 * I), jnp.float32),   # decoder input gates
            ],
        ),
        compiler_params=pltpu.CompilerParams(
            dimension_semantics=("arbitrary",),
        ),
    )(x_2d, w_ih_e, w_hh_e, b_e, w_ih_d, w_hh_d, b_d)

    out_tbi = out_2d.reshape(T, Bp, I)[:, :B, :]
    return jnp.transpose(out_tbi, (1, 0, 2))                # (B, T, I)


# ----------------------------- pure-JAX reference ---------------------------

def lstm_layer_ref(x_tbi, w_ih_t, w_hh_t, bias):
    """Single-layer LSTM reference (lax.scan), identical semantics to nn.LSTM."""
    H = w_hh_t.shape[0]
    B = x_tbi.shape[1]
    hp = jax.lax.Precision.HIGHEST   # exact f32 reference matmuls

    def step(carry, x_t):
        h, c = carry
        gates = (jnp.dot(x_t, w_ih_t, precision=hp)
                 + jnp.dot(h, w_hh_t, precision=hp) + bias)
        i_g = jax.nn.sigmoid(gates[:, 0 * H:1 * H])
        f_g = jax.nn.sigmoid(gates[:, 1 * H:2 * H])
        g_g = jnp.tanh(gates[:, 2 * H:3 * H])
        o_g = jax.nn.sigmoid(gates[:, 3 * H:4 * H])
        c = f_g * c + i_g * g_g
        h = o_g * jnp.tanh(c)
        return (h, c), h

    init = (jnp.zeros((B, H), jnp.float32), jnp.zeros((B, H), jnp.float32))
    _, hs = lax.scan(step, init, x_tbi)
    return hs


def aed_shakespear_forward_ref(x_bti, enc_params, dec_params):
    x_tbi = jnp.transpose(x_bti, (1, 0, 2))
    encoded = lstm_layer_ref(x_tbi, *enc_params)
    decoded = lstm_layer_ref(encoded, *dec_params)
    return jnp.transpose(decoded, (1, 0, 2))


def init_lstm_params(key, input_size, hidden_size):
    """Deterministic init matching nn.LSTM shapes: U(-1/sqrt(H), 1/sqrt(H))."""
    k1, k2, k3, k4 = jax.random.split(key, 4)
    bound = 1.0 / np.sqrt(hidden_size)
    # Stored pre-transposed for right-multiplication: x @ W_ih^T -> (I, 4H).
    w_ih_t = jax.random.uniform(k1, (input_size, 4 * hidden_size),
                                jnp.float32, -bound, bound)
    w_hh_t = jax.random.uniform(k2, (hidden_size, 4 * hidden_size),
                                jnp.float32, -bound, bound)
    b_ih = jax.random.uniform(k3, (4 * hidden_size,), jnp.float32, -bound, bound)
    b_hh = jax.random.uniform(k4, (4 * hidden_size,), jnp.float32, -bound, bound)
    bias = (b_ih + b_hh).reshape(1, 4 * hidden_size)
    return w_ih_t, w_hh_t, bias


if __name__ == "__main__":
    # Small shapes consistent with the module's forward: (batch, seq, input_size)
    B, T = 2, 8
    input_size, hidden_size = 16, 32

    key = jax.random.PRNGKey(0)
    k_x, k_enc, k_dec = jax.random.split(key, 3)

    x = jax.random.normal(k_x, (B, T, input_size), jnp.float32)

    enc_params = init_lstm_params(k_enc, input_size, hidden_size)   # LSTM(I -> H)
    dec_params = init_lstm_params(k_dec, hidden_size, input_size)   # LSTM(H -> I)

    out = jax.block_until_ready(
        aed_shakespear_forward(x, enc_params, dec_params))
    ref = jax.block_until_ready(
        aed_shakespear_forward_ref(x, enc_params, dec_params))

    assert out.shape == (B, T, input_size)
    # Tolerance covers possible MXU precision-mode differences between the
    # Mosaic in-kernel matmuls and the XLA reference; structural errors (wrong
    # gate order, missing bias, wrong recurrence) are orders of magnitude larger.
    np.testing.assert_allclose(np.asarray(out), np.asarray(ref),
                               rtol=1e-2, atol=1e-2)

    print("KERNEL_OK")
</pallas_src>

<mosaic_0001>
module attributes {stable_mosaic.version = 11 : i64} {
  func.func @kernel(%arg0: i32, %arg1: memref<64x16xf32, #tpu.memory_space<vmem>>, %arg2: memref<16x128xf32, #tpu.memory_space<vmem>>, %arg3: memref<32x128xf32, #tpu.memory_space<vmem>>, %arg4: memref<1x128xf32, #tpu.memory_space<vmem>>, %arg5: memref<32x64xf32, #tpu.memory_space<vmem>>, %arg6: memref<16x64xf32, #tpu.memory_space<vmem>>, %arg7: memref<1x64xf32, #tpu.memory_space<vmem>>, %arg8: memref<64x16xf32, #tpu.memory_space<vmem>>, %arg9: memref<64x128xf32, #tpu.memory_space<vmem>>, %arg10: memref<64x32xf32, #tpu.memory_space<vmem>>, %arg11: memref<64x64xf32, #tpu.memory_space<vmem>>) attributes {dimension_semantics = [#tpu.dimension_semantics<arbitrary>], iteration_bounds = array<i64: 1>, scalar_prefetch = 0 : i64, scratch_operands = 3 : i64, tpu.core_type = #tpu.core_type<tc>, window_params = [{pipeline_mode = #tpu.pipeline_mode<synchronous>, transform_indices = @transform_0, window_bounds = array<i64: 64, 16>}, {pipeline_mode = #tpu.pipeline_mode<synchronous>, transform_indices = @transform_1, window_bounds = array<i64: 16, 128>}, {pipeline_mode = #tpu.pipeline_mode<synchronous>, transform_indices = @transform_2, window_bounds = array<i64: 32, 128>}, {pipeline_mode = #tpu.pipeline_mode<synchronous>, transform_indices = @transform_3, window_bounds = array<i64: 1, 128>}, {pipeline_mode = #tpu.pipeline_mode<synchronous>, transform_indices = @transform_4, window_bounds = array<i64: 32, 64>}, {pipeline_mode = #tpu.pipeline_mode<synchronous>, transform_indices = @transform_5, window_bounds = array<i64: 16, 64>}, {pipeline_mode = #tpu.pipeline_mode<synchronous>, transform_indices = @transform_6, window_bounds = array<i64: 1, 64>}, {pipeline_mode = #tpu.pipeline_mode<synchronous>, transform_indices = @transform_7, window_bounds = array<i64: 64, 16>}]} {
    %c0 = arith.constant 0 : index
    %c0_0 = arith.constant 0 : index
    %0 = vector.load %arg1[%c0, %c0_0] : memref<64x16xf32, #tpu.memory_space<vmem>>, vector<64x16xf32>
    %c0_1 = arith.constant 0 : index
    %c0_2 = arith.constant 0 : index
    %1 = vector.load %arg2[%c0_1, %c0_2] : memref<16x128xf32, #tpu.memory_space<vmem>>, vector<16x128xf32>
    %cst = arith.constant dense<0.000000e+00> : vector<64x128xf32>
    %2 = tpu.matmul %0, %1, %cst {dimension_numbers = #tpu.dot_dimension_numbers<[1], [0], [0], [1], [0, 0, 1, 1], [], []>} : vector<64x16xf32>, vector<16x128xf32>, vector<64x128xf32> -> vector<64x128xf32>
    %c0_3 = arith.constant 0 : index
    %c0_4 = arith.constant 0 : index
    %3 = vector.load %arg4[%c0_3, %c0_4] : memref<1x128xf32, #tpu.memory_space<vmem>>, vector<1x128xf32>
    %4 = vector.broadcast %3 : vector<1x128xf32> to vector<64x128xf32>
    %5 = arith.addf %2, %4 : vector<64x128xf32>
    %c0_5 = arith.constant 0 : index
    %c0_6 = arith.constant 0 : index
    %6 = vector.load %arg9[%c0_5, %c0_6] : memref<64x128xf32, #tpu.memory_space<vmem>>, vector<64x128xf32>
    tpu.vector_store %arg9[%c0_5, %c0_6], %5 {strides = array<i32>} : memref<64x128xf32, #tpu.memory_space<vmem>>, vector<64x128xf32>,
    %cst_7 = arith.constant 0.000000e+00 : f32
    %7 = vector.broadcast %cst_7 : f32 to vector<8x32xf32>
    %cst_8 = arith.constant 0.000000e+00 : f32
    %8 = vector.broadcast %cst_8 : f32 to vector<8x32xf32>
    %c0_i32 = arith.constant 0 : i32
    %c8_i32 = arith.constant 8 : i32
    %9 = arith.muli %c0_i32, %c8_i32 : i32
    %10 = tpu.assume_multiple %9, 8 : i32
    %11 = arith.index_cast %10 : i32 to index
    %c0_9 = arith.constant 0 : index
    %12 = vector.load %arg9[%11, %c0_9] : memref<64x128xf32, #tpu.memory_space<vmem>>, vector<8x128xf32>
    %c0_10 = arith.constant 0 : index
    %c0_11 = arith.constant 0 : index
    %13 = vector.load %arg3[%c0_10, %c0_11] : memref<32x128xf32, #tpu.memory_space<vmem>>, vector<32x128xf32>
    %cst_12 = arith.constant dense<0.000000e+00> : vector<8x128xf32>
    %14 = tpu.matmul %7, %13, %cst_12 {dimension_numbers = #tpu.dot_dimension_numbers<[1], [0], [0], [1], [0, 0, 1, 1], [], []>} : vector<8x32xf32>, vector<32x128xf32>, vector<8x128xf32> -> vector<8x128xf32>
    %15 = arith.addf %12, %14 : vector<8x128xf32>
    %16 = vector.extract_strided_slice %15 {offsets = [0, 0], sizes = [8, 32], strides = [1, 1]} : vector<8x128xf32> to vector<8x32xf32>
    %17 = arith.negf %16 : vector<8x32xf32>
    %18 = math.exp %17 : vector<8x32xf32>
    %cst_13 = arith.constant 1.000000e+00 : f32
    %19 = vector.broadcast %cst_13 : f32 to vector<8x32xf32>
    %20 = arith.addf %19, %18 : vector<8x32xf32>
    %21 = arith.divf %19, %20 : vector<8x32xf32>
    %22 = vector.extract_strided_slice %15 {offsets = [0, 32], sizes = [8, 32], strides = [1, 1]} : vector<8x128xf32> to vector<8x32xf32>
    %23 = arith.negf %22 : vector<8x32xf32>
    %24 = math.exp %23 : vector<8x32xf32>
    %cst_14 = arith.constant 1.000000e+00 : f32
    %25 = vector.broadcast %cst_14 : f32 to vector<8x32xf32>
    %26 = arith.addf %25, %24 : vector<8x32xf32>
    %27 = arith.divf %25, %26 : vector<8x32xf32>
    %28 = vector.extract_strided_slice %15 {offsets = [0, 64], sizes = [8, 32], strides = [1, 1]} : vector<8x128xf32> to vector<8x32xf32>
    %29 = math.tanh %28 : vector<8x32xf32>
    %30 = vector.extract_strided_slice %15 {offsets = [0, 96], sizes = [8, 32], strides = [1, 1]} : vector<8x128xf32> to vector<8x32xf32>
    %31 = arith.negf %30 : vector<8x32xf32>
    %32 = math.exp %31 : vector<8x32xf32>
    %cst_15 = arith.constant 1.000000e+00 : f32
    %33 = vector.broadcast %cst_15 : f32 to vector<8x32xf32>
    %34 = arith.addf %33, %32 : vector<8x32xf32>
    %35 = arith.divf %33, %34 : vector<8x32xf32>
    %36 = arith.mulf %27, %8 : vector<8x32xf32>
    %37 = arith.mulf %21, %29 : vector<8x32xf32>
    %38 = arith.addf %36, %37 : vector<8x32xf32>
    %39 = math.tanh %38 : vector<8x32xf32>
    %40 = arith.mulf %35, %39 : vector<8x32xf32>
    %41 = arith.index_cast %10 : i32 to index
    %c0_16 = arith.constant 0 : index
    %42 = vector.load %arg10[%41, %c0_16] : memref<64x32xf32, #tpu.memory_space<vmem>>, vector<8x32xf32>
    tpu.vector_store %arg10[%41, %c0_16], %40 {strides = array<i32>} : memref<64x32xf32, #tpu.memory_space<vmem>>, vector<8x32xf32>,
    %c1_i32 = arith.constant 1 : i32
    %c8_i32_17 = arith.constant 8 : i32
    %43 = arith.muli %c1_i32, %c8_i32_17 : i32
    %44 = tpu.assume_multiple %43, 8 : i32
    %45 = arith.index_cast %44 : i32 to index
    %c0_18 = arith.constant 0 : index
    %46 = vector.load %arg9[%45, %c0_18] : memref<64x128xf32, #tpu.memory_space<vmem>>, vector<8x128xf32>
    %c0_19 = arith.constant 0 : index
    %c0_20 = arith.constant 0 : index
    %47 = vector.load %arg3[%c0_19, %c0_20] : memref<32x128xf32, #tpu.memory_space<vmem>>, vector<32x128xf32>
    %cst_21 = arith.constant dense<0.000000e+00> : vector<8x128xf32>
    %48 = tpu.matmul %40, %47, %cst_21 {dimension_numbers = #tpu.dot_dimension_numbers<[1], [0], [0], [1], [0, 0, 1, 1], [], []>} : vector<8x32xf32>, vector<32x128xf32>, vector<8x128xf32> -> vector<8x128xf32>
    %49 = arith.addf %46, %48 : vector<8x128xf32>
    %50 = vector.extract_strided_slice %49 {offsets = [0, 0], sizes = [8, 32], strides = [1, 1]} : vector<8x128xf32> to vector<8x32xf32>
    %51 = arith.negf %50 : vector<8x32xf32>
    %52 = math.exp %51 : vector<8x32xf32>
    %cst_22 = arith.constant 1.000000e+00 : f32
    %53 = vector.broadcast %cst_22 : f32 to vector<8x32xf32>
    %54 = arith.addf %53, %52 : vector<8x32xf32>
    %55 = arith.divf %53, %54 : vector<8x32xf32>
    %56 = vector.extract_strided_slice %49 {offsets = [0, 32], sizes = [8, 32], strides = [1, 1]} : vector<8x128xf32> to vector<8x32xf32>
    %57 = arith.negf %56 : vector<8x32xf32>
    %58 = math.exp %57 : vector<8x32xf32>
    %cst_23 = arith.constant 1.000000e+00 : f32
    %59 = vector.broadcast %cst_23 : f32 to vector<8x32xf32>
    %60 = arith.addf %59, %58 : vector<8x32xf32>
    %61 = arith.divf %59, %60 : vector<8x32xf32>
    %62 = vector.extract_strided_slice %49 {offsets = [0, 64], sizes = [8, 32], strides = [1, 1]} : vector<8x128xf32> to vector<8x32xf32>
    %63 = math.tanh %62 : vector<8x32xf32>
    %64 = vector.extract_strided_slice %49 {offsets = [0, 96], sizes = [8, 32], strides = [1, 1]} : vector<8x128xf32> to vector<8x32xf32>
    %65 = arith.negf %64 : vector<8x32xf32>
    %66 = math.exp %65 : vector<8x32xf32>
    %cst_24 = arith.constant 1.000000e+00 : f32
    %67 = vector.broadcast %cst_24 : f32 to vector<8x32xf32>
    %68 = arith.addf %67, %66 : vector<8x32xf32>
    %69 = arith.divf %67, %68 : vector<8x32xf32>
    %70 = arith.mulf %61, %38 : vector<8x32xf32>
    %71 = arith.mulf %55, %63 : vector<8x32xf32>
    %72 = arith.addf %70, %71 : vector<8x32xf32>
    %73 = math.tanh %72 : vector<8x32xf32>
    %74 = arith.mulf %69, %73 : vector<8x32xf32>
    %75 = arith.index_cast %44 : i32 to index
    %c0_25 = arith.constant 0 : index
    %76 = vector.load %arg10[%75, %c0_25] : memref<64x32xf32, #tpu.memory_space<vmem>>, vector<8x32xf32>
    tpu.vector_store %arg10[%75, %c0_25], %74 {strides = array<i32>} : memref<64x32xf32, #tpu.memory_space<vmem>>, vector<8x32xf32>,
    %c2_i32 = arith.constant 2 : i32
    %c8_i32_26 = arith.constant 8 : i32
    %77 = arith.muli %c2_i32, %c8_i32_26 : i32
    %78 = tpu.assume_multiple %77, 8 : i32
    %79 = arith.index_cast %78 : i32 to index
    %c0_27 = arith.constant 0 : index
    %80 = vector.load %arg9[%79, %c0_27] : memref<64x128xf32, #tpu.memory_space<vmem>>, vector<8x128xf32>
    %c0_28 = arith.constant 0 : index
    %c0_29 = arith.constant 0 : index
    %81 = vector.load %arg3[%c0_28, %c0_29] : memref<32x128xf32, #tpu.memory_space<vmem>>, vector<32x128xf32>
    %cst_30 = arith.constant dense<0.000000e+00> : vector<8x128xf32>
    %82 = tpu.matmul %74, %81, %cst_30 {dimension_numbers = #tpu.dot_dimension_numbers<[1], [0], [0], [1], [0, 0, 1, 1], [], []>} : vector<8x32xf32>, vector<32x128xf32>, vector<8x128xf32> -> vector<8x128xf32>
    %83 = arith.addf %80, %82 : vector<8x128xf32>
    %84 = vector.extract_strided_slice %83 {offsets = [0, 0], sizes = [8, 32], strides = [1, 1]} : vector<8x128xf32> to vector<8x32xf32>
    %85 = arith.negf %84 : vector<8x32xf32>
    %86 = math.exp %85 : vector<8x32xf32>
    %cst_31 = arith.constant 1.000000e+00 : f32
    %87 = vector.broadcast %cst_31 : f32 to vector<8x32xf32>
    %88 = arith.addf %87, %86 : vector<8x32xf32>
    %89 = arith.divf %87, %88 : vector<8x32xf32>
    %90 = vector.extract_strided_slice %83 {offsets = [0, 32], sizes = [8, 32], strides = [1, 1]} : vector<8x128xf32> to vector<8x32xf32>
    %91 = arith.negf %90 : vector<8x32xf32>
    %92 = math.exp %91 : vector<8x32xf32>
    %cst_32 = arith.constant 1.000000e+00 : f32
    %93 = vector.broadcast %cst_32 : f32 to vector<8x32xf32>
    %94 = arith.addf %93, %92 : vector<8x32xf32>
    %95 = arith.divf %93, %94 : vector<8x32xf32>
    %96 = vector.extract_strided_slice %83 {offsets = [0, 64], sizes = [8, 32], strides = [1, 1]} : vector<8x128xf32> to vector<8x32xf32>
    %97 = math.tanh %96 : vector<8x32xf32>
    %98 = vector.extract_strided_slice %83 {offsets = [0, 96], sizes = [8, 32], strides = [1, 1]} : vector<8x128xf32> to vector<8x32xf32>
    %99 = arith.negf %98 : vector<8x32xf32>
    %100 = math.exp %99 : vector<8x32xf32>
    %cst_33 = arith.constant 1.000000e+00 : f32
    %101 = vector.broadcast %cst_33 : f32 to vector<8x32xf32>
    %102 = arith.addf %101, %100 : vector<8x32xf32>
    %103 = arith.divf %101, %102 : vector<8x32xf32>
    %104 = arith.mulf %95, %72 : vector<8x32xf32>
    %105 = arith.mulf %89, %97 : vector<8x32xf32>
    %106 = arith.addf %104, %105 : vector<8x32xf32>
    %107 = math.tanh %106 : vector<8x32xf32>
    %108 = arith.mulf %103, %107 : vector<8x32xf32>
    %109 = arith.index_cast %78 : i32 to index
    %c0_34 = arith.constant 0 : index
    %110 = vector.load %arg10[%109, %c0_34] : memref<64x32xf32, #tpu.memory_space<vmem>>, vector<8x32xf32>
    tpu.vector_store %arg10[%109, %c0_34], %108 {strides = array<i32>} : memref<64x32xf32, #tpu.memory_space<vmem>>, vector<8x32xf32>,
    %c3_i32 = arith.constant 3 : i32
    %c8_i32_35 = arith.constant 8 : i32
    %111 = arith.muli %c3_i32, %c8_i32_35 : i32
    %112 = tpu.assume_multiple %111, 8 : i32
    %113 = arith.index_cast %112 : i32 to index
    %c0_36 = arith.constant 0 : index
    %114 = vector.load %arg9[%113, %c0_36] : memref<64x128xf32, #tpu.memory_space<vmem>>, vector<8x128xf32>
    %c0_37 = arith.constant 0 : index
    %c0_38 = arith.constant 0 : index
    %115 = vector.load %arg3[%c0_37, %c0_38] : memref<32x128xf32, #tpu.memory_space<vmem>>, vector<32x128xf32>
    %cst_39 = arith.constant dense<0.000000e+00> : vector<8x128xf32>
    %116 = tpu.matmul %108, %115, %cst_39 {dimension_numbers = #tpu.dot_dimension_numbers<[1], [0], [0], [1], [0, 0, 1, 1], [], []>} : vector<8x32xf32>, vector<32x128xf32>, vector<8x128xf32> -> vector<8x128xf32>
    %117 = arith.addf %114, %116 : vector<8x128xf32>
    %118 = vector.extract_strided_slice %117 {offsets = [0, 0], sizes = [8, 32], strides = [1, 1]} : vector<8x128xf32> to vector<8x32xf32>
    %119 = arith.negf %118 : vector<8x32xf32>
    %120 = math.exp %119 : vector<8x32xf32>
    %cst_40 = arith.constant 1.000000e+00 : f32
    %121 = vector.broadcast %cst_40 : f32 to vector<8x32xf32>
    %122 = arith.addf %121, %120 : vector<8x32xf32>
    %123 = arith.divf %121, %122 : vector<8x32xf32>
    %124 = vector.extract_strided_slice %117 {offsets = [0, 32], sizes = [8, 32], strides = [1, 1]} : vector<8x128xf32> to vector<8x32xf32>
    %125 = arith.negf %124 : vector<8x32xf32>
    %126 = math.exp %125 : vector<8x32xf32>
    %cst_41 = arith.constant 1.000000e+00 : f32
    %127 = vector.broadcast %cst_41 : f32 to vector<8x32xf32>
    %128 = arith.addf %127, %126 : vector<8x32xf32>
    %129 = arith.divf %127, %128 : vector<8x32xf32>
    %130 = vector.extract_strided_slice %117 {offsets = [0, 64], sizes = [8, 32], strides = [1, 1]} : vector<8x128xf32> to vector<8x32xf32>
    %131 = math.tanh %130 : vector<8x32xf32>
    %132 = vector.extract_strided_slice %117 {offsets = [0, 96], sizes = [8, 32], strides = [1, 1]} : vector<8x128xf32> to vector<8x32xf32>
    %133 = arith.negf %132 : vector<8x32xf32>
    %134 = math.exp %133 : vector<8x32xf32>
    %cst_42 = arith.constant 1.000000e+00 : f32
    %135 = vector.broadcast %cst_42 : f32 to vector<8x32xf32>
    %136 = arith.addf %135, %134 : vector<8x32xf32>
    %137 = arith.divf %135, %136 : vector<8x32xf32>
    %138 = arith.mulf %129, %106 : vector<8x32xf32>
    %139 = arith.mulf %123, %131 : vector<8x32xf32>
    %140 = arith.addf %138, %139 : vector<8x32xf32>
    %141 = math.tanh %140 : vector<8x32xf32>
    %142 = arith.mulf %137, %141 : vector<8x32xf32>
    %143 = arith.index_cast %112 : i32 to index
    %c0_43 = arith.constant 0 : index
    %144 = vector.load %arg10[%143, %c0_43] : memref<64x32xf32, #tpu.memory_space<vmem>>, vector<8x32xf32>
    tpu.vector_store %arg10[%143, %c0_43], %142 {strides = array<i32>} : memref<64x32xf32, #tpu.memory_space<vmem>>, vector<8x32xf32>,
    %c4_i32 = arith.constant 4 : i32
    %c8_i32_44 = arith.constant 8 : i32
    %145 = arith.muli %c4_i32, %c8_i32_44 : i32
    %146 = tpu.assume_multiple %145, 8 : i32
    %147 = arith.index_cast %146 : i32 to index
    %c0_45 = arith.constant 0 : index
    %148 = vector.load %arg9[%147, %c0_45] : memref<64x128xf32, #tpu.memory_space<vmem>>, vector<8x128xf32>
    %c0_46 = arith.constant 0 : index
    %c0_47 = arith.constant 0 : index
    %149 = vector.load %arg3[%c0_46, %c0_47] : memref<32x128xf32, #tpu.memory_space<vmem>>, vector<32x128xf32>
    %cst_48 = arith.constant dense<0.000000e+00> : vector<8x128xf32>
    %150 = tpu.matmul %142, %149, %cst_48 {dimension_numbers = #tpu.dot_dimension_numbers<[1], [0], [0], [1], [0, 0, 1, 1], [], []>} : vector<8x32xf32>, vector<32x128xf32>, vector<8x128xf32> -> vector<8x128xf32>
    %151 = arith.addf %148, %150 : vector<8x128xf32>
    %152 = vector.extract_strided_slice %151 {offsets = [0, 0], sizes = [8, 32], strides = [1, 1]} : vector<8x128xf32> to vector<8x32xf32>
    %153 = arith.negf %152 : vector<8x32xf32>
    %154 = math.exp %153 : vector<8x32xf32>
    %cst_49 = arith.constant 1.000000e+00 : f32
    %155 = vector.broadcast %cst_49 : f32 to vector<8x32xf32>
    %156 = arith.addf %155, %154 : vector<8x32xf32>
    %157 = arith.divf %155, %156 : vector<8x32xf32>
    %158 = vector.extract_strided_slice %151 {offsets = [0, 32], sizes = [8, 32], strides = [1, 1]} : vector<8x128xf32> to vector<8x32xf32>
    %159 = arith.negf %158 : vector<8x32xf32>
    %160 = math.exp %159 : vector<8x32xf32>
    %cst_50 = arith.constant 1.000000e+00 : f32
    %161 = vector.broadcast %cst_50 : f32 to vector<8x32xf32>
    %162 = arith.addf %161, %160 : vector<8x32xf32>
    %163 = arith.divf %161, %162 : vector<8x32xf32>
    %164 = vector.extract_strided_slice %151 {offsets = [0, 64], sizes = [8, 32], strides = [1, 1]} : vector<8x128xf32> to vector<8x32xf32>
    %165 = math.tanh %164 : vector<8x32xf32>
    %166 = vector.extract_strided_slice %151 {offsets = [0, 96], sizes = [8, 32], strides = [1, 1]} : vector<8x128xf32> to vector<8x32xf32>
    %167 = arith.negf %166 : vector<8x32xf32>
    %168 = math.exp %167 : vector<8x32xf32>
    %cst_51 = arith.constant 1.000000e+00 : f32
    %169 = vector.broadcast %cst_51 : f32 to vector<8x32xf32>
    %170 = arith.addf %169, %168 : vector<8x32xf32>
    %171 = arith.divf %169, %170 : vector<8x32xf32>
    %172 = arith.mulf %163, %140 : vector<8x32xf32>
    %173 = arith.mulf %157, %165 : vector<8x32xf32>
    %174 = arith.addf %172, %173 : vector<8x32xf32>
    %175 = math.tanh %174 : vector<8x32xf32>
    %176 = arith.mulf %171, %175 : vector<8x32xf32>
    %177 = arith.index_cast %146 : i32 to index
    %c0_52 = arith.constant 0 : index
    %178 = vector.load %arg10[%177, %c0_52] : memref<64x32xf32, #tpu.memory_space<vmem>>, vector<8x32xf32>
    tpu.vector_store %arg10[%177, %c0_52], %176 {strides = array<i32>} : memref<64x32xf32, #tpu.memory_space<vmem>>, vector<8x32xf32>,
    %c5_i32 = arith.constant 5 : i32
    %c8_i32_53 = arith.constant 8 : i32
    %179 = arith.muli %c5_i32, %c8_i32_53 : i32
    %180 = tpu.assume_multiple %179, 8 : i32
    %181 = arith.index_cast %180 : i32 to index
    %c0_54 = arith.constant 0 : index
    %182 = vector.load %arg9[%181, %c0_54] : memref<64x128xf32, #tpu.memory_space<vmem>>, vector<8x128xf32>
    %c0_55 = arith.constant 0 : index
    %c0_56 = arith.constant 0 : index
    %183 = vector.load %arg3[%c0_55, %c0_56] : memref<32x128xf32, #tpu.memory_space<vmem>>, vector<32x128xf32>
    %cst_57 = arith.constant dense<0.000000e+00> : vector<8x128xf32>
    %184 = tpu.matmul %176, %183, %cst_57 {dimension_numbers = #tpu.dot_dimension_numbers<[1], [0], [0], [1], [0, 0, 1, 1], [], []>} : vector<8x32xf32>, vector<32x128xf32>, vector<8x128xf32> -> vector<8x128xf32>
    %185 = arith.addf %182, %184 : vector<8x128xf32>
    %186 = vector.extract_strided_slice %185 {offsets = [0, 0], sizes = [8, 32], strides = [1, 1]} : vector<8x128xf32> to vector<8x32xf32>
    %187 = arith.negf %186 : vector<8x32xf32>
    %188 = math.exp %187 : vector<8x32xf32>
    %cst_58 = arith.constant 1.000000e+00 : f32
    %189 = vector.broadcast %cst_58 : f32 to vector<8x32xf32>
    %190 = arith.addf %189, %188 : vector<8x32xf32>
    %191 = arith.divf %189, %190 : vector<8x32xf32>
    %192 = vector.extract_strided_slice %185 {offsets = [0, 32], sizes = [8, 32], strides = [1, 1]} : vector<8x128xf32> to vector<8x32xf32>
    %193 = arith.negf %192 : vector<8x32xf32>
    %194 = math.exp %193 : vector<8x32xf32>
    %cst_59 = arith.constant 1.000000e+00 : f32
    %195 = vector.broadcast %cst_59 : f32 to vector<8x32xf32>
    %196 = arith.addf %195, %194 : vector<8x32xf32>
    %197 = arith.divf %195, %196 : vector<8x32xf32>
    %198 = vector.extract_strided_slice %185 {offsets = [0, 64], sizes = [8, 32], strides = [1, 1]} : vector<8x128xf32> to vector<8x32xf32>
    %199 = math.tanh %198 : vector<8x32xf32>
    %200 = vector.extract_strided_slice %185 {offsets = [0, 96], sizes = [8, 32], strides = [1, 1]} : vector<8x128xf32> to vector<8x32xf32>
    %201 = arith.negf %200 : vector<8x32xf32>
    %202 = math.exp %201 : vector<8x32xf32>
    %cst_60 = arith.constant 1.000000e+00 : f32
    %203 = vector.broadcast %cst_60 : f32 to vector<8x32xf32>
    %204 = arith.addf %203, %202 : vector<8x32xf32>
    %205 = arith.divf %203, %204 : vector<8x32xf32>
    %206 = arith.mulf %197, %174 : vector<8x32xf32>
    %207 = arith.mulf %191, %199 : vector<8x32xf32>
    %208 = arith.addf %206, %207 : vector<8x32xf32>
    %209 = math.tanh %208 : vector<8x32xf32>
    %210 = arith.mulf %205, %209 : vector<8x32xf32>
    %211 = arith.index_cast %180 : i32 to index
    %c0_61 = arith.constant 0 : index
    %212 = vector.load %arg10[%211, %c0_61] : memref<64x32xf32, #tpu.memory_space<vmem>>, vector<8x32xf32>
    tpu.vector_store %arg10[%211, %c0_61], %210 {strides = array<i32>} : memref<64x32xf32, #tpu.memory_space<vmem>>, vector<8x32xf32>,
    %c6_i32 = arith.constant 6 : i32
    %c8_i32_62 = arith.constant 8 : i32
    %213 = arith.muli %c6_i32, %c8_i32_62 : i32
    %214 = tpu.assume_multiple %213, 8 : i32
    %215 = arith.index_cast %214 : i32 to index
    %c0_63 = arith.constant 0 : index
    %216 = vector.load %arg9[%215, %c0_63] : memref<64x128xf32, #tpu.memory_space<vmem>>, vector<8x128xf32>
    %c0_64 = arith.constant 0 : index
    %c0_65 = arith.constant 0 : index
    %217 = vector.load %arg3[%c0_64, %c0_65] : memref<32x128xf32, #tpu.memory_space<vmem>>, vector<32x128xf32>
    %cst_66 = arith.constant dense<0.000000e+00> : vector<8x128xf32>
    %218 = tpu.matmul %210, %217, %cst_66 {dimension_numbers = #tpu.dot_dimension_numbers<[1], [0], [0], [1], [0, 0, 1, 1], [], []>} : vector<8x32xf32>, vector<32x128xf32>, vector<8x128xf32> -> vector<8x128xf32>
    %219 = arith.addf %216, %218 : vector<8x128xf32>
    %220 = vector.extract_strided_slice %219 {offsets = [0, 0], sizes = [8, 32], strides = [1, 1]} : vector<8x128xf32> to vector<8x32xf32>
    %221 = arith.negf %220 : vector<8x32xf32>
    %222 = math.exp %221 : vector<8x32xf32>
    %cst_67 = arith.constant 1.000000e+00 : f32
    %223 = vector.broadcast %cst_67 : f32 to vector<8x32xf32>
    %224 = arith.addf %223, %222 : vector<8x32xf32>
    %225 = arith.divf %223, %224 : vector<8x32xf32>
    %226 = vector.extract_strided_slice %219 {offsets = [0, 32], sizes = [8, 32], strides = [1, 1]} : vector<8x128xf32> to vector<8x32xf32>
    %227 = arith.negf %226 : vector<8x32xf32>
    %228 = math.exp %227 : vector<8x32xf32>
    %cst_68 = arith.constant 1.000000e+00 : f32
    %229 = vector.broadcast %cst_68 : f32 to vector<8x32xf32>
    %230 = arith.addf %229, %228 : vector<8x32xf32>
    %231 = arith.divf %229, %230 : vector<8x32xf32>
    %232 = vector.extract_strided_slice %219 {offsets = [0, 64], sizes = [8, 32], strides = [1, 1]} : vector<8x128xf32> to vector<8x32xf32>
    %233 = math.tanh %232 : vector<8x32xf32>
    %234 = vector.extract_strided_slice %219 {offsets = [0, 96], sizes = [8, 32], strides = [1, 1]} : vector<8x128xf32> to vector<8x32xf32>
    %235 = arith.negf %234 : vector<8x32xf32>
    %236 = math.exp %235 : vector<8x32xf32>
    %cst_69 = arith.constant 1.000000e+00 : f32
    %237 = vector.broadcast %cst_69 : f32 to vector<8x32xf32>
    %238 = arith.addf %237, %236 : vector<8x32xf32>
    %239 = arith.divf %237, %238 : vector<8x32xf32>
    %240 = arith.mulf %231, %208 : vector<8x32xf32>
    %241 = arith.mulf %225, %233 : vector<8x32xf32>
    %242 = arith.addf %240, %241 : vector<8x32xf32>
    %243 = math.tanh %242 : vector<8x32xf32>
    %244 = arith.mulf %239, %243 : vector<8x32xf32>
    %245 = arith.index_cast %214 : i32 to index
    %c0_70 = arith.constant 0 : index
    %246 = vector.load %arg10[%245, %c0_70] : memref<64x32xf32, #tpu.memory_space<vmem>>, vector<8x32xf32>
    tpu.vector_store %arg10[%245, %c0_70], %244 {strides = array<i32>} : memref<64x32xf32, #tpu.memory_space<vmem>>, vector<8x32xf32>,
    %c7_i32 = arith.constant 7 : i32
    %c8_i32_71 = arith.constant 8 : i32
    %247 = arith.muli %c7_i32, %c8_i32_71 : i32
    %248 = tpu.assume_multiple %247, 8 : i32
    %249 = arith.index_cast %248 : i32 to index
    %c0_72 = arith.constant 0 : index
    %250 = vector.load %arg9[%249, %c0_72] : memref<64x128xf32, #tpu.memory_space<vmem>>, vector<8x128xf32>
    %c0_73 = arith.constant 0 : index
    %c0_74 = arith.constant 0 : index
    %251 = vector.load %arg3[%c0_73, %c0_74] : memref<32x128xf32, #tpu.memory_space<vmem>>, vector<32x128xf32>
    %cst_75 = arith.constant dense<0.000000e+00> : vector<8x128xf32>
    %252 = tpu.matmul %244, %251, %cst_75 {dimension_numbers = #tpu.dot_dimension_numbers<[1], [0], [0], [1], [0, 0, 1, 1], [], []>} : vector<8x32xf32>, vector<32x128xf32>, vector<8x128xf32> -> vector<8x128xf32>
    %253 = arith.addf %250, %252 : vector<8x128xf32>
    %254 = vector.extract_strided_slice %253 {offsets = [0, 0], sizes = [8, 32], strides = [1, 1]} : vector<8x128xf32> to vector<8x32xf32>
    %255 = arith.negf %254 : vector<8x32xf32>
    %256 = math.exp %255 : vector<8x32xf32>
    %cst_76 = arith.constant 1.000000e+00 : f32
    %257 = vector.broadcast %cst_76 : f32 to vector<8x32xf32>
    %258 = arith.addf %257, %256 : vector<8x32xf32>
    %259 = arith.divf %257, %258 : vector<8x32xf32>
    %260 = vector.extract_strided_slice %253 {offsets = [0, 32], sizes = [8, 32], strides = [1, 1]} : vector<8x128xf32> to vector<8x32xf32>
    %261 = arith.negf %260 : vector<8x32xf32>
    %262 = math.exp %261 : vector<8x32xf32>
    %cst_77 = arith.constant 1.000000e+00 : f32
    %263 = vector.broadcast %cst_77 : f32 to vector<8x32xf32>
    %264 = arith.addf %263, %262 : vector<8x32xf32>
    %265 = arith.divf %263, %264 : vector<8x32xf32>
    %266 = vector.extract_strided_slice %253 {offsets = [0, 64], sizes = [8, 32], strides = [1, 1]} : vector<8x128xf32> to vector<8x32xf32>
    %267 = math.tanh %266 : vector<8x32xf32>
    %268 = vector.extract_strided_slice %253 {offsets = [0, 96], sizes = [8, 32], strides = [1, 1]} : vector<8x128xf32> to vector<8x32xf32>
    %269 = arith.negf %268 : vector<8x32xf32>
    %270 = math.exp %269 : vector<8x32xf32>
    %cst_78 = arith.constant 1.000000e+00 : f32
    %271 = vector.broadcast %cst_78 : f32 to vector<8x32xf32>
    %272 = arith.addf %271, %270 : vector<8x32xf32>
    %273 = arith.divf %271, %272 : vector<8x32xf32>
    %274 = arith.mulf %265, %242 : vector<8x32xf32>
    %275 = arith.mulf %259, %267 : vector<8x32xf32>
    %276 = arith.addf %274, %275 : vector<8x32xf32>
    %277 = math.tanh %276 : vector<8x32xf32>
    %278 = arith.mulf %273, %277 : vector<8x32xf32>
    %279 = arith.index_cast %248 : i32 to index
    %c0_79 = arith.constant 0 : index
    %280 = vector.load %arg10[%279, %c0_79] : memref<64x32xf32, #tpu.memory_space<vmem>>, vector<8x32xf32>
    tpu.vector_store %arg10[%279, %c0_79], %278 {strides = array<i32>} : memref<64x32xf32, #tpu.memory_space<vmem>>, vector<8x32xf32>,
    %c8_i32_80 = arith.constant 8 : i32
    %c0_81 = arith.constant 0 : index
    %c0_82 = arith.constant 0 : index
    %281 = vector.load %arg10[%c0_81, %c0_82] : memref<64x32xf32, #tpu.memory_space<vmem>>, vector<64x32xf32>
    %c0_83 = arith.constant 0 : index
    %c0_84 = arith.constant 0 : index
    %282 = vector.load %arg5[%c0_83, %c0_84] : memref<32x64xf32, #tpu.memory_space<vmem>>, vector<32x64xf32>
    %cst_85 = arith.constant dense<0.000000e+00> : vector<64x64xf32>
    %283 = tpu.matmul %281, %282, %cst_85 {dimension_numbers = #tpu.dot_dimension_numbers<[1], [0], [0], [1], [0, 0, 1, 1], [], []>} : vector<64x32xf32>, vector<32x64xf32>, vector<64x64xf32> -> vector<64x64xf32>
    %c0_86 = arith.constant 0 : index
    %c0_87 = arith.constant 0 : index
    %284 = vector.load %arg7[%c0_86, %c0_87] : memref<1x64xf32, #tpu.memory_space<vmem>>, vector<1x64xf32>
    %285 = vector.broadcast %284 : vector<1x64xf32> to vector<64x64xf32>
    %286 = arith.addf %283, %285 : vector<64x64xf32>
    %c0_88 = arith.constant 0 : index
    %c0_89 = arith.constant 0 : index
    %287 = vector.load %arg11[%c0_88, %c0_89] : memref<64x64xf32, #tpu.memory_space<vmem>>, vector<64x64xf32>
    tpu.vector_store %arg11[%c0_88, %c0_89], %286 {strides = array<i32>} : memref<64x64xf32, #tpu.memory_space<vmem>>, vector<64x64xf32>,
    %cst_90 = arith.constant 0.000000e+00 : f32
    %288 = vector.broadcast %cst_90 : f32 to vector<8x16xf32>
    %cst_91 = arith.constant 0.000000e+00 : f32
    %289 = vector.broadcast %cst_91 : f32 to vector<8x16xf32>
    %c0_i32_92 = arith.constant 0 : i32
    %c8_i32_93 = arith.constant 8 : i32
    %290 = arith.muli %c0_i32_92, %c8_i32_93 : i32
    %291 = tpu.assume_multiple %290, 8 : i32
    %292 = arith.index_cast %291 : i32 to index
    %c0_94 = arith.constant 0 : index
    %293 = vector.load %arg11[%292, %c0_94] : memref<64x64xf32, #tpu.memory_space<vmem>>, vector<8x64xf32>
    %c0_95 = arith.constant 0 : index
    %c0_96 = arith.constant 0 : index
    %294 = vector.load %arg6[%c0_95, %c0_96] : memref<16x64xf32, #tpu.memory_space<vmem>>, vector<16x64xf32>
    %cst_97 = arith.constant dense<0.000000e+00> : vector<8x64xf32>
    %295 = tpu.matmul %288, %294, %cst_97 {dimension_numbers = #tpu.dot_dimension_numbers<[1], [0], [0], [1], [0, 0, 1, 1], [], []>} : vector<8x16xf32>, vector<16x64xf32>, vector<8x64xf32> -> vector<8x64xf32>
    %296 = arith.addf %293, %295 : vector<8x64xf32>
    %297 = vector.extract_strided_slice %296 {offsets = [0, 0], sizes = [8, 16], strides = [1, 1]} : vector<8x64xf32> to vector<8x16xf32>
    %298 = arith.negf %297 : vector<8x16xf32>
    %299 = math.exp %298 : vector<8x16xf32>
    %cst_98 = arith.constant 1.000000e+00 : f32
    %300 = vector.broadcast %cst_98 : f32 to vector<8x16xf32>
    %301 = arith.addf %300, %299 : vector<8x16xf32>
    %302 = arith.divf %300, %301 : vector<8x16xf32>
    %303 = vector.extract_strided_slice %296 {offsets = [0, 16], sizes = [8, 16], strides = [1, 1]} : vector<8x64xf32> to vector<8x16xf32>
    %304 = arith.negf %303 : vector<8x16xf32>
    %305 = math.exp %304 : vector<8x16xf32>
    %cst_99 = arith.constant 1.000000e+00 : f32
    %306 = vector.broadcast %cst_99 : f32 to vector<8x16xf32>
    %307 = arith.addf %306, %305 : vector<8x16xf32>
    %308 = arith.divf %306, %307 : vector<8x16xf32>
    %309 = vector.extract_strided_slice %296 {offsets = [0, 32], sizes = [8, 16], strides = [1, 1]} : vector<8x64xf32> to vector<8x16xf32>
    %310 = math.tanh %309 : vector<8x16xf32>
    %311 = vector.extract_strided_slice %296 {offsets = [0, 48], sizes = [8, 16], strides = [1, 1]} : vector<8x64xf32> to vector<8x16xf32>
    %312 = arith.negf %311 : vector<8x16xf32>
    %313 = math.exp %312 : vector<8x16xf32>
    %cst_100 = arith.constant 1.000000e+00 : f32
    %314 = vector.broadcast %cst_100 : f32 to vector<8x16xf32>
    %315 = arith.addf %314, %313 : vector<8x16xf32>
    %316 = arith.divf %314, %315 : vector<8x16xf32>
    %317 = arith.mulf %308, %289 : vector<8x16xf32>
    %318 = arith.mulf %302, %310 : vector<8x16xf32>
    %319 = arith.addf %317, %318 : vector<8x16xf32>
    %320 = math.tanh %319 : vector<8x16xf32>
    %321 = arith.mulf %316, %320 : vector<8x16xf32>
    %322 = arith.index_cast %291 : i32 to index
    %c0_101 = arith.constant 0 : index
    %323 = vector.load %arg8[%322, %c0_101] : memref<64x16xf32, #tpu.memory_space<vmem>>, vector<8x16xf32>
    tpu.vector_store %arg8[%322, %c0_101], %321 {strides = array<i32>} : memref<64x16xf32, #tpu.memory_space<vmem>>, vector<8x16xf32>,
    %c1_i32_102 = arith.constant 1 : i32
    %c8_i32_103 = arith.constant 8 : i32
    %324 = arith.muli %c1_i32_102, %c8_i32_103 : i32
    %325 = tpu.assume_multiple %324, 8 : i32
    %326 = arith.index_cast %325 : i32 to index
    %c0_104 = arith.constant 0 : index
    %327 = vector.load %arg11[%326, %c0_104] : memref<64x64xf32, #tpu.memory_space<vmem>>, vector<8x64xf32>
    %c0_105 = arith.constant 0 : index
    %c0_106 = arith.constant 0 : index
    %328 = vector.load %arg6[%c0_105, %c0_106] : memref<16x64xf32, #tpu.memory_space<vmem>>, vector<16x64xf32>
    %cst_107 = arith.constant dense<0.000000e+00> : vector<8x64xf32>
    %329 = tpu.matmul %321, %328, %cst_107 {dimension_numbers = #tpu.dot_dimension_numbers<[1], [0], [0], [1], [0, 0, 1, 1], [], []>} : vector<8x16xf32>, vector<16x64xf32>, vector<8x64xf32> -> vector<8x64xf32>
    %330 = arith.addf %327, %329 : vector<8x64xf32>
    %331 = vector.extract_strided_slice %330 {offsets = [0, 0], sizes = [8, 16], strides = [1, 1]} : vector<8x64xf32> to vector<8x16xf32>
    %332 = arith.negf %331 : vector<8x16xf32>
    %333 = math.exp %332 : vector<8x16xf32>
    %cst_108 = arith.constant 1.000000e+00 : f32
    %334 = vector.broadcast %cst_108 : f32 to vector<8x16xf32>
    %335 = arith.addf %334, %333 : vector<8x16xf32>
    %336 = arith.divf %334, %335 : vector<8x16xf32>
    %337 = vector.extract_strided_slice %330 {offsets = [0, 16], sizes = [8, 16], strides = [1, 1]} : vector<8x64xf32> to vector<8x16xf32>
    %338 = arith.negf %337 : vector<8x16xf32>
    %339 = math.exp %338 : vector<8x16xf32>
    %cst_109 = arith.constant 1.000000e+00 : f32
    %340 = vector.broadcast %cst_109 : f32 to vector<8x16xf32>
    %341 = arith.addf %340, %339 : vector<8x16xf32>
    %342 = arith.divf %340, %341 : vector<8x16xf32>
    %343 = vector.extract_strided_slice %330 {offsets = [0, 32], sizes = [8, 16], strides = [1, 1]} : vector<8x64xf32> to vector<8x16xf32>
    %344 = math.tanh %343 : vector<8x16xf32>
    %345 = vector.extract_strided_slice %330 {offsets = [0, 48], sizes = [8, 16], strides = [1, 1]} : vector<8x64xf32> to vector<8x16xf32>
    %346 = arith.negf %345 : vector<8x16xf32>
    %347 = math.exp %346 : vector<8x16xf32>
    %cst_110 = arith.constant 1.000000e+00 : f32
    %348 = vector.broadcast %cst_110 : f32 to vector<8x16xf32>
    %349 = arith.addf %348, %347 : vector<8x16xf32>
    %350 = arith.divf %348, %349 : vector<8x16xf32>
    %351 = arith.mulf %342, %319 : vector<8x16xf32>
    %352 = arith.mulf %336, %344 : vector<8x16xf32>
    %353 = arith.addf %351, %352 : vector<8x16xf32>
    %354 = math.tanh %353 : vector<8x16xf32>
    %355 = arith.mulf %350, %354 : vector<8x16xf32>
    %356 = arith.index_cast %325 : i32 to index
    %c0_111 = arith.constant 0 : index
    %357 = vector.load %arg8[%356, %c0_111] : memref<64x16xf32, #tpu.memory_space<vmem>>, vector<8x16xf32>
    tpu.vector_store %arg8[%356, %c0_111], %355 {strides = array<i32>} : memref<64x16xf32, #tpu.memory_space<vmem>>, vector<8x16xf32>,
    %c2_i32_112 = arith.constant 2 : i32
    %c8_i32_113 = arith.constant 8 : i32
    %358 = arith.muli %c2_i32_112, %c8_i32_113 : i32
    %359 = tpu.assume_multiple %358, 8 : i32
    %360 = arith.index_cast %359 : i32 to index
    %c0_114 = arith.constant 0 : index
    %361 = vector.load %arg11[%360, %c0_114] : memref<64x64xf32, #tpu.memory_space<vmem>>, vector<8x64xf32>
    %c0_115 = arith.constant 0 : index
    %c0_116 = arith.constant 0 : index
    %362 = vector.load %arg6[%c0_115, %c0_116] : memref<16x64xf32, #tpu.memory_space<vmem>>, vector<16x64xf32>
    %cst_117 = arith.constant dense<0.000000e+00> : vector<8x64xf32>
    %363 = tpu.matmul %355, %362, %cst_117 {dimension_numbers = #tpu.dot_dimension_numbers<[1], [0], [0], [1], [0, 0, 1, 1], [], []>} : vector<8x16xf32>, vector<16x64xf32>, vector<8x64xf32> -> vector<8x64xf32>
    %364 = arith.addf %361, %363 : vector<8x64xf32>
    %365 = vector.extract_strided_slice %364 {offsets = [0, 0], sizes = [8, 16], strides = [1, 1]} : vector<8x64xf32> to vector<8x16xf32>
    %366 = arith.negf %365 : vector<8x16xf32>
    %367 = math.exp %366 : vector<8x16xf32>
    %cst_118 = arith.constant 1.000000e+00 : f32
    %368 = vector.broadcast %cst_118 : f32 to vector<8x16xf32>
    %369 = arith.addf %368, %367 : vector<8x16xf32>
    %370 = arith.divf %368, %369 : vector<8x16xf32>
    %371 = vector.extract_strided_slice %364 {offsets = [0, 16], sizes = [8, 16], strides = [1, 1]} : vector<8x64xf32> to vector<8x16xf32>
    %372 = arith.negf %371 : vector<8x16xf32>
    %373 = math.exp %372 : vector<8x16xf32>
    %cst_119 = arith.constant 1.000000e+00 : f32
    %374 = vector.broadcast %cst_119 : f32 to vector<8x16xf32>
    %375 = arith.addf %374, %373 : vector<8x16xf32>
    %376 = arith.divf %374, %375 : vector<8x16xf32>
    %377 = vector.extract_strided_slice %364 {offsets = [0, 32], sizes = [8, 16], strides = [1, 1]} : vector<8x64xf32> to vector<8x16xf32>
    %378 = math.tanh %377 : vector<8x16xf32>
    %379 = vector.extract_strided_slice %364 {offsets = [0, 48], sizes = [8, 16], strides = [1, 1]} : vector<8x64xf32> to vector<8x16xf32>
    %380 = arith.negf %379 : vector<8x16xf32>
    %381 = math.exp %380 : vector<8x16xf32>
    %cst_120 = arith.constant 1.000000e+00 : f32
    %382 = vector.broadcast %cst_120 : f32 to vector<8x16xf32>
    %383 = arith.addf %382, %381 : vector<8x16xf32>
    %384 = arith.divf %382, %383 : vector<8x16xf32>
    %385 = arith.mulf %376, %353 : vector<8x16xf32>
    %386 = arith.mulf %370, %378 : vector<8x16xf32>
    %387 = arith.addf %385, %386 : vector<8x16xf32>
    %388 = math.tanh %387 : vector<8x16xf32>
    %389 = arith.mulf %384, %388 : vector<8x16xf32>
    %390 = arith.index_cast %359 : i32 to index
    %c0_121 = arith.constant 0 : index
    %391 = vector.load %arg8[%390, %c0_121] : memref<64x16xf32, #tpu.memory_space<vmem>>, vector<8x16xf32>
    tpu.vector_store %arg8[%390, %c0_121], %389 {strides = array<i32>} : memref<64x16xf32, #tpu.memory_space<vmem>>, vector<8x16xf32>,
    %c3_i32_122 = arith.constant 3 : i32
    %c8_i32_123 = arith.constant 8 : i32
    %392 = arith.muli %c3_i32_122, %c8_i32_123 : i32
    %393 = tpu.assume_multiple %392, 8 : i32
    %394 = arith.index_cast %393 : i32 to index
    %c0_124 = arith.constant 0 : index
    %395 = vector.load %arg11[%394, %c0_124] : memref<64x64xf32, #tpu.memory_space<vmem>>, vector<8x64xf32>
    %c0_125 = arith.constant 0 : index
    %c0_126 = arith.constant 0 : index
    %396 = vector.load %arg6[%c0_125, %c0_126] : memref<16x64xf32, #tpu.memory_space<vmem>>, vector<16x64xf32>
    %cst_127 = arith.constant dense<0.000000e+00> : vector<8x64xf32>
    %397 = tpu.matmul %389, %396, %cst_127 {dimension_numbers = #tpu.dot_dimension_numbers<[1], [0], [0], [1], [0, 0, 1, 1], [], []>} : vector<8x16xf32>, vector<16x64xf32>, vector<8x64xf32> -> vector<8x64xf32>
    %398 = arith.addf %395, %397 : vector<8x64xf32>
    %399 = vector.extract_strided_slice %398 {offsets = [0, 0], sizes = [8, 16], strides = [1, 1]} : vector<8x64xf32> to vector<8x16xf32>
    %400 = arith.negf %399 : vector<8x16xf32>
    %401 = math.exp %400 : vector<8x16xf32>
    %cst_128 = arith.constant 1.000000e+00 : f32
    %402 = vector.broadcast %cst_128 : f32 to vector<8x16xf32>
    %403 = arith.addf %402, %401 : vector<8x16xf32>
    %404 = arith.divf %402, %403 : vector<8x16xf32>
    %405 = vector.extract_strided_slice %398 {offsets = [0, 16], sizes = [8, 16], strides = [1, 1]} : vector<8x64xf32> to vector<8x16xf32>
    %406 = arith.negf %405 : vector<8x16xf32>
    %407 = math.exp %406 : vector<8x16xf32>
    %cst_129 = arith.constant 1.000000e+00 : f32
    %408 = vector.broadcast %cst_129 : f32 to vector<8x16xf32>
    %409 = arith.addf %408, %407 : vector<8x16xf32>
    %410 = arith.divf %408, %409 : vector<8x16xf32>
    %411 = vector.extract_strided_slice %398 {offsets = [0, 32], sizes = [8, 16], strides = [1, 1]} : vector<8x64xf32> to vector<8x16xf32>
    %412 = math.tanh %411 : vector<8x16xf32>
    %413 = vector.extract_strided_slice %398 {offsets = [0, 48], sizes = [8, 16], strides = [1, 1]} : vector<8x64xf32> to vector<8x16xf32>
    %414 = arith.negf %413 : vector<8x16xf32>
    %415 = math.exp %414 : vector<8x16xf32>
    %cst_130 = arith.constant 1.000000e+00 : f32
    %416 = vector.broadcast %cst_130 : f32 to vector<8x16xf32>
    %417 = arith.addf %416, %415 : vector<8x16xf32>
    %418 = arith.divf %416, %417 : vector<8x16xf32>
    %419 = arith.mulf %410, %387 : vector<8x16xf32>
    %420 = arith.mulf %404, %412 : vector<8x16xf32>
    %421 = arith.addf %419, %420 : vector<8x16xf32>
    %422 = math.tanh %421 : vector<8x16xf32>
    %423 = arith.mulf %418, %422 : vector<8x16xf32>
    %424 = arith.index_cast %393 : i32 to index
    %c0_131 = arith.constant 0 : index
    %425 = vector.load %arg8[%424, %c0_131] : memref<64x16xf32, #tpu.memory_space<vmem>>, vector<8x16xf32>
    tpu.vector_store %arg8[%424, %c0_131], %423 {strides = array<i32>} : memref<64x16xf32, #tpu.memory_space<vmem>>, vector<8x16xf32>,
    %c4_i32_132 = arith.constant 4 : i32
    %c8_i32_133 = arith.constant 8 : i32
    %426 = arith.muli %c4_i32_132, %c8_i32_133 : i32
    %427 = tpu.assume_multiple %426, 8 : i32
    %428 = arith.index_cast %427 : i32 to index
    %c0_134 = arith.constant 0 : index
    %429 = vector.load %arg11[%428, %c0_134] : memref<64x64xf32, #tpu.memory_space<vmem>>, vector<8x64xf32>
    %c0_135 = arith.constant 0 : index
    %c0_136 = arith.constant 0 : index
    %430 = vector.load %arg6[%c0_135, %c0_136] : memref<16x64xf32, #tpu.memory_space<vmem>>, vector<16x64xf32>
    %cst_137 = arith.constant dense<0.000000e+00> : vector<8x64xf32>
    %431 = tpu.matmul %423, %430, %cst_137 {dimension_numbers = #tpu.dot_dimension_numbers<[1], [0], [0], [1], [0, 0, 1, 1], [], []>} : vector<8x16xf32>, vector<16x64xf32>, vector<8x64xf32> -> vector<8x64xf32>
    %432 = arith.addf %429, %431 : vector<8x64xf32>
    %433 = vector.extract_strided_slice %432 {offsets = [0, 0], sizes = [8, 16], strides = [1, 1]} : vector<8x64xf32> to vector<8x16xf32>
    %434 = arith.negf %433 : vector<8x16xf32>
    %435 = math.exp %434 : vector<8x16xf32>
    %cst_138 = arith.constant 1.000000e+00 : f32
    %436 = vector.broadcast %cst_138 : f32 to vector<8x16xf32>
    %437 = arith.addf %436, %435 : vector<8x16xf32>
    %438 = arith.divf %436, %437 : vector<8x16xf32>
    %439 = vector.extract_strided_slice %432 {offsets = [0, 16], sizes = [8, 16], strides = [1, 1]} : vector<8x64xf32> to vector<8x16xf32>
    %440 = arith.negf %439 : vector<8x16xf32>
    %441 = math.exp %440 : vector<8x16xf32>
    %cst_139 = arith.constant 1.000000e+00 : f32
    %442 = vector.broadcast %cst_139 : f32 to vector<8x16xf32>
    %443 = arith.addf %442, %441 : vector<8x16xf32>
    %444 = arith.divf %442, %443 : vector<8x16xf32>
    %445 = vector.extract_strided_slice %432 {offsets = [0, 32], sizes = [8, 16], strides = [1, 1]} : vector<8x64xf32> to vector<8x16xf32>
    %446 = math.tanh %445 : vector<8x16xf32>
    %447 = vector.extract_strided_slice %432 {offsets = [0, 48], sizes = [8, 16], strides = [1, 1]} : vector<8x64xf32> to vector<8x16xf32>
    %448 = arith.negf %447 : vector<8x16xf32>
    %449 = math.exp %448 : vector<8x16xf32>
    %cst_140 = arith.constant 1.000000e+00 : f32
    %450 = vector.broadcast %cst_140 : f32 to vector<8x16xf32>
    %451 = arith.addf %450, %449 : vector<8x16xf32>
    %452 = arith.divf %450, %451 : vector<8x16xf32>
    %453 = arith.mulf %444, %421 : vector<8x16xf32>
    %454 = arith.mulf %438, %446 : vector<8x16xf32>
    %455 = arith.addf %453, %454 : vector<8x16xf32>
    %456 = math.tanh %455 : vector<8x16xf32>
    %457 = arith.mulf %452, %456 : vector<8x16xf32>
    %458 = arith.index_cast %427 : i32 to index
    %c0_141 = arith.constant 0 : index
    %459 = vector.load %arg8[%458, %c0_141] : memref<64x16xf32, #tpu.memory_space<vmem>>, vector<8x16xf32>
    tpu.vector_store %arg8[%458, %c0_141], %457 {strides = array<i32>} : memref<64x16xf32, #tpu.memory_space<vmem>>, vector<8x16xf32>,
    %c5_i32_142 = arith.constant 5 : i32
    %c8_i32_143 = arith.constant 8 : i32
    %460 = arith.muli %c5_i32_142, %c8_i32_143 : i32
    %461 = tpu.assume_multiple %460, 8 : i32
    %462 = arith.index_cast %461 : i32 to index
    %c0_144 = arith.constant 0 : index
    %463 = vector.load %arg11[%462, %c0_144] : memref<64x64xf32, #tpu.memory_space<vmem>>, vector<8x64xf32>
    %c0_145 = arith.constant 0 : index
    %c0_146 = arith.constant 0 : index
    %464 = vector.load %arg6[%c0_145, %c0_146] : memref<16x64xf32, #tpu.memory_space<vmem>>, vector<16x64xf32>
    %cst_147 = arith.constant dense<0.000000e+00> : vector<8x64xf32>
    %465 = tpu.matmul %457, %464, %cst_147 {dimension_numbers = #tpu.dot_dimension_numbers<[1], [0], [0], [1], [0, 0, 1, 1], [], []>} : vector<8x16xf32>, vector<16x64xf32>, vector<8x64xf32> -> vector<8x64xf32>
    %466 = arith.addf %463, %465 : vector<8x64xf32>
    %467 = vector.extract_strided_slice %466 {offsets = [0, 0], sizes = [8, 16], strides = [1, 1]} : vector<8x64xf32> to vector<8x16xf32>
    %468 = arith.negf %467 : vector<8x16xf32>
    %469 = math.exp %468 : vector<8x16xf32>
    %cst_148 = arith.constant 1.000000e+00 : f32
    %470 = vector.broadcast %cst_148 : f32 to vector<8x16xf32>
    %471 = arith.addf %470, %469 : vector<8x16xf32>
    %472 = arith.divf %470, %471 : vector<8x16xf32>
    %473 = vector.extract_strided_slice %466 {offsets = [0, 16], sizes = [8, 16], strides = [1, 1]} : vector<8x64xf32> to vector<8x16xf32>
    %474 = arith.negf %473 : vector<8x16xf32>
    %475 = math.exp %474 : vector<8x16xf32>
    %cst_149 = arith.constant 1.000000e+00 : f32
    %476 = vector.broadcast %cst_149 : f32 to vector<8x16xf32>
    %477 = arith.addf %476, %475 : vector<8x16xf32>
    %478 = arith.divf %476, %477 : vector<8x16xf32>
    %479 = vector.extract_strided_slice %466 {offsets = [0, 32], sizes = [8, 16], strides = [1, 1]} : vector<8x64xf32> to vector<8x16xf32>
    %480 = math.tanh %479 : vector<8x16xf32>
    %481 = vector.extract_strided_slice %466 {offsets = [0, 48], sizes = [8, 16], strides = [1, 1]} : vector<8x64xf32> to vector<8x16xf32>
    %482 = arith.negf %481 : vector<8x16xf32>
    %483 = math.exp %482 : vector<8x16xf32>
    %cst_150 = arith.constant 1.000000e+00 : f32
    %484 = vector.broadcast %cst_150 : f32 to vector<8x16xf32>
    %485 = arith.addf %484, %483 : vector<8x16xf32>
    %486 = arith.divf %484, %485 : vector<8x16xf32>
    %487 = arith.mulf %478, %455 : vector<8x16xf32>
    %488 = arith.mulf %472, %480 : vector<8x16xf32>
    %489 = arith.addf %487, %488 : vector<8x16xf32>
    %490 = math.tanh %489 : vector<8x16xf32>
    %491 = arith.mulf %486, %490 : vector<8x16xf32>
    %492 = arith.index_cast %461 : i32 to index
    %c0_151 = arith.constant 0 : index
    %493 = vector.load %arg8[%492, %c0_151] : memref<64x16xf32, #tpu.memory_space<vmem>>, vector<8x16xf32>
    tpu.vector_store %arg8[%492, %c0_151], %491 {strides = array<i32>} : memref<64x16xf32, #tpu.memory_space<vmem>>, vector<8x16xf32>,
    %c6_i32_152 = arith.constant 6 : i32
    %c8_i32_153 = arith.constant 8 : i32
    %494 = arith.muli %c6_i32_152, %c8_i32_153 : i32
    %495 = tpu.assume_multiple %494, 8 : i32
    %496 = arith.index_cast %495 : i32 to index
    %c0_154 = arith.constant 0 : index
    %497 = vector.load %arg11[%496, %c0_154] : memref<64x64xf32, #tpu.memory_space<vmem>>, vector<8x64xf32>
    %c0_155 = arith.constant 0 : index
    %c0_156 = arith.constant 0 : index
    %498 = vector.load %arg6[%c0_155, %c0_156] : memref<16x64xf32, #tpu.memory_space<vmem>>, vector<16x64xf32>
    %cst_157 = arith.constant dense<0.000000e+00> : vector<8x64xf32>
    %499 = tpu.matmul %491, %498, %cst_157 {dimension_numbers = #tpu.dot_dimension_numbers<[1], [0], [0], [1], [0, 0, 1, 1], [], []>} : vector<8x16xf32>, vector<16x64xf32>, vector<8x64xf32> -> vector<8x64xf32>
    %500 = arith.addf %497, %499 : vector<8x64xf32>
    %501 = vector.extract_strided_slice %500 {offsets = [0, 0], sizes = [8, 16], strides = [1, 1]} : vector<8x64xf32> to vector<8x16xf32>
    %502 = arith.negf %501 : vector<8x16xf32>
    %503 = math.exp %502 : vector<8x16xf32>
    %cst_158 = arith.constant 1.000000e+00 : f32
    %504 = vector.broadcast %cst_158 : f32 to vector<8x16xf32>
    %505 = arith.addf %504, %503 : vector<8x16xf32>
    %506 = arith.divf %504, %505 : vector<8x16xf32>
    %507 = vector.extract_strided_slice %500 {offsets = [0, 16], sizes = [8, 16], strides = [1, 1]} : vector<8x64xf32> to vector<8x16xf32>
    %508 = arith.negf %507 : vector<8x16xf32>
    %509 = math.exp %508 : vector<8x16xf32>
    %cst_159 = arith.constant 1.000000e+00 : f32
    %510 = vector.broadcast %cst_159 : f32 to vector<8x16xf32>
    %511 = arith.addf %510, %509 : vector<8x16xf32>
    %512 = arith.divf %510, %511 : vector<8x16xf32>
    %513 = vector.extract_strided_slice %500 {offsets = [0, 32], sizes = [8, 16], strides = [1, 1]} : vector<8x64xf32> to vector<8x16xf32>
    %514 = math.tanh %513 : vector<8x16xf32>
    %515 = vector.extract_strided_slice %500 {offsets = [0, 48], sizes = [8, 16], strides = [1, 1]} : vector<8x64xf32> to vector<8x16xf32>
    %516 = arith.negf %515 : vector<8x16xf32>
    %517 = math.exp %516 : vector<8x16xf32>
    %cst_160 = arith.constant 1.000000e+00 : f32
    %518 = vector.broadcast %cst_160 : f32 to vector<8x16xf32>
    %519 = arith.addf %518, %517 : vector<8x16xf32>
    %520 = arith.divf %518, %519 : vector<8x16xf32>
    %521 = arith.mulf %512, %489 : vector<8x16xf32>
    %522 = arith.mulf %506, %514 : vector<8x16xf32>
    %523 = arith.addf %521, %522 : vector<8x16xf32>
    %524 = math.tanh %523 : vector<8x16xf32>
    %525 = arith.mulf %520, %524 : vector<8x16xf32>
    %526 = arith.index_cast %495 : i32 to index
    %c0_161 = arith.constant 0 : index
    %527 = vector.load %arg8[%526, %c0_161] : memref<64x16xf32, #tpu.memory_space<vmem>>, vector<8x16xf32>
    tpu.vector_store %arg8[%526, %c0_161], %525 {strides = array<i32>} : memref<64x16xf32, #tpu.memory_space<vmem>>, vector<8x16xf32>,
    %c7_i32_162 = arith.constant 7 : i32
    %c8_i32_163 = arith.constant 8 : i32
    %528 = arith.muli %c7_i32_162, %c8_i32_163 : i32
    %529 = tpu.assume_multiple %528, 8 : i32
    %530 = arith.index_cast %529 : i32 to index
    %c0_164 = arith.constant 0 : index
    %531 = vector.load %arg11[%530, %c0_164] : memref<64x64xf32, #tpu.memory_space<vmem>>, vector<8x64xf32>
    %c0_165 = arith.constant 0 : index
    %c0_166 = arith.constant 0 : index
    %532 = vector.load %arg6[%c0_165, %c0_166] : memref<16x64xf32, #tpu.memory_space<vmem>>, vector<16x64xf32>
    %cst_167 = arith.constant dense<0.000000e+00> : vector<8x64xf32>
    %533 = tpu.matmul %525, %532, %cst_167 {dimension_numbers = #tpu.dot_dimension_numbers<[1], [0], [0], [1], [0, 0, 1, 1], [], []>} : vector<8x16xf32>, vector<16x64xf32>, vector<8x64xf32> -> vector<8x64xf32>
    %534 = arith.addf %531, %533 : vector<8x64xf32>
    %535 = vector.extract_strided_slice %534 {offsets = [0, 0], sizes = [8, 16], strides = [1, 1]} : vector<8x64xf32> to vector<8x16xf32>
    %536 = arith.negf %535 : vector<8x16xf32>
    %537 = math.exp %536 : vector<8x16xf32>
    %cst_168 = arith.constant 1.000000e+00 : f32
    %538 = vector.broadcast %cst_168 : f32 to vector<8x16xf32>
    %539 = arith.addf %538, %537 : vector<8x16xf32>
    %540 = arith.divf %538, %539 : vector<8x16xf32>
    %541 = vector.extract_strided_slice %534 {offsets = [0, 16], sizes = [8, 16], strides = [1, 1]} : vector<8x64xf32> to vector<8x16xf32>
    %542 = arith.negf %541 : vector<8x16xf32>
    %543 = math.exp %542 : vector<8x16xf32>
    %cst_169 = arith.constant 1.000000e+00 : f32
    %544 = vector.broadcast %cst_169 : f32 to vector<8x16xf32>
    %545 = arith.addf %544, %543 : vector<8x16xf32>
    %546 = arith.divf %544, %545 : vector<8x16xf32>
    %547 = vector.extract_strided_slice %534 {offsets = [0, 32], sizes = [8, 16], strides = [1, 1]} : vector<8x64xf32> to vector<8x16xf32>
    %548 = math.tanh %547 : vector<8x16xf32>
    %549 = vector.extract_strided_slice %534 {offsets = [0, 48], sizes = [8, 16], strides = [1, 1]} : vector<8x64xf32> to vector<8x16xf32>
    %550 = arith.negf %549 : vector<8x16xf32>
    %551 = math.exp %550 : vector<8x16xf32>
    %cst_170 = arith.constant 1.000000e+00 : f32
    %552 = vector.broadcast %cst_170 : f32 to vector<8x16xf32>
    %553 = arith.addf %552, %551 : vector<8x16xf32>
    %554 = arith.divf %552, %553 : vector<8x16xf32>
    %555 = arith.mulf %546, %523 : vector<8x16xf32>
    %556 = arith.mulf %540, %548 : vector<8x16xf32>
    %557 = arith.addf %555, %556 : vector<8x16xf32>
    %558 = math.tanh %557 : vector<8x16xf32>
    %559 = arith.mulf %554, %558 : vector<8x16xf32>
    %560 = arith.index_cast %529 : i32 to index
    %c0_171 = arith.constant 0 : index
    %561 = vector.load %arg8[%560, %c0_171] : memref<64x16xf32, #tpu.memory_space<vmem>>, vector<8x16xf32>
    tpu.vector_store %arg8[%560, %c0_171], %559 {strides = array<i32>} : memref<64x16xf32, #tpu.memory_space<vmem>>, vector<8x16xf32>,
    %c8_i32_172 = arith.constant 8 : i32
    return
  }
  func.func @transform_0(%arg0: i32) -> (i32, i32) {
    %c0_i32 = arith.constant 0 : i32
    %c0_i32_0 = arith.constant 0 : i32
    %c0_i32_1 = arith.constant 0 : i32
    return %c0_i32, %c0_i32_0 : i32, i32
  }
  func.func @transform_1(%arg0: i32) -> (i32, i32) {
    %c0_i32 = arith.constant 0 : i32
    %c0_i32_0 = arith.constant 0 : i32
    %c0_i32_1 = arith.constant 0 : i32
    return %c0_i32, %c0_i32_0 : i32, i32
  }
  func.func @transform_2(%arg0: i32) -> (i32, i32) {
    %c0_i32 = arith.constant 0 : i32
    %c0_i32_0 = arith.constant 0 : i32
    %c0_i32_1 = arith.constant 0 : i32
    return %c0_i32, %c0_i32_0 : i32, i32
  }
  func.func @transform_3(%arg0: i32) -> (i32, i32) {
    %c0_i32 = arith.constant 0 : i32
    %c0_i32_0 = arith.constant 0 : i32
    %c0_i32_1 = arith.constant 0 : i32
    return %c0_i32, %c0_i32_0 : i32, i32
  }
  func.func @transform_4(%arg0: i32) -> (i32, i32) {
    %c0_i32 = arith.constant 0 : i32
    %c0_i32_0 = arith.constant 0 : i32
    %c0_i32_1 = arith.constant 0 : i32
    return %c0_i32, %c0_i32_0 : i32, i32
  }
  func.func @transform_5(%arg0: i32) -> (i32, i32) {
    %c0_i32 = arith.constant 0 : i32
    %c0_i32_0 = arith.constant 0 : i32
    %c0_i32_1 = arith.constant 0 : i32
    return %c0_i32, %c0_i32_0 : i32, i32
  }
  func.func @transform_6(%arg0: i32) -> (i32, i32) {
    %c0_i32 = arith.constant 0 : i32
    %c0_i32_0 = arith.constant 0 : i32
    %c0_i32_1 = arith.constant 0 : i32
    return %c0_i32, %c0_i32_0 : i32, i32
  }
  func.func @transform_7(%arg0: i32) -> (i32, i32) {
    %c0_i32 = arith.constant 0 : i32
    %c0_i32_0 = arith.constant 0 : i32
    %c0_i32_1 = arith.constant 0 : i32
    return %c0_i32, %c0_i32_0 : i32, i32
  }
}

</mosaic_0001>

<llo_original>
// kernel: tpu_custom_call.1
$region0: #{tpu_custom_call.1}
  #allocation0 [shape = 'u32[]', space=smem, size = 0x4, offset = 0x4, fixed_abs, tag = 'smem constant byte address 0x4 - core index']
  #allocation1 [shape = 'u32[72,128]{1,0:T(1,128)}', space=vmem, size = 0x9000, scoped, tag = 'internal scratch']
  #allocation2 [shape = 'f32[64,128]{1,0:T(8,128)}', space=vmem, size = 0x8000, scoped, tag = 'scratch operand']
  #allocation3 [shape = 'f32[64,32]{1,0:T(8,128)}', space=vmem, size = 0x8000, scoped, tag = 'scratch operand']
  #allocation4 [shape = 'f32[64,64]{1,0:T(8,128)}', space=vmem, size = 0x8000, scoped, tag = 'scratch operand']
  %s0 = inlined_call_operand.vmem [shape: f32[64,16], index: 0, kind: input, shape index: {}]
  %s1 = inlined_call_operand.vmem [shape: f32[16,128], index: 1, kind: input, shape index: {}]
  %s2 = inlined_call_operand.vmem [shape: f32[32,128], index: 2, kind: input, shape index: {}]
  %s3 = inlined_call_operand.vmem [shape: f32[1,128], index: 3, kind: input, shape index: {}]
  %s4 = inlined_call_operand.vmem [shape: f32[32,64], index: 4, kind: input, shape index: {}]
  %s5 = inlined_call_operand.hbm [shape: f32[16,64], index: 5, kind: input, shape index: {}]
  %s6 = inlined_call_operand.vmem [shape: f32[1,64], index: 6, kind: input, shape index: {}]
  %s7 = inlined_call_operand.vmem [shape: f32[64,16], index: 7, kind: output, shape index: {}]
  %s8 = sld [smem:[#allocation0]]
  $region42: #{tpu_custom_call.1} parent=0
    _
  %s10 = ssub.s32 1, %s8
  %s11 = scalar_select 0, %s10, %s8
  $region1: #{tpu_custom_call.1} parent=0
    #allocation5 [shape = 'u8[8192]{0}', space=vmem, size = 0x2000, scoped, tag = 'input window, operand 5, single buffered']
    #allocation6 [shape = 's32[1]{0}', space=sflag, size = 0x4, scoped, tag = 'scoped memory for tpu_custom_call.1']
    %12 = vsyncpa [#allocation6], 0
    // Predicated region
    $region2: #{tpu_custom_call.1} parent=1 // pred_check
      _
    $region3: #{tpu_custom_call.1} parent=1 // pred_check_branch
      %14 = sbr.rel (0) target = $region5
    $region4: #{tpu_custom_call.1} parent=1 // pred_region
      _
    $region5: #{tpu_custom_call.1} parent=1 // pred_fallthru
      _
    // Predicated region
    $region6: #{tpu_custom_call.1} parent=1 // pred_check
      _
    $region7: #{tpu_custom_call.1} parent=1 // pred_check_branch
      %16 = sbr.rel (0) target = $region9
    $region8: #{tpu_custom_call.1} parent=1 // pred_region
      _
    $region9: #{tpu_custom_call.1} parent=1 // pred_fallthru
      _
    // Predicated region
    $region10: #{tpu_custom_call.1} parent=1 // pred_check
      _
    $region11: #{tpu_custom_call.1} parent=1 // pred_check_branch
      %18 = sbr.rel (0) target = $region13
    $region12: #{tpu_custom_call.1} parent=1 // pred_region
      _
    $region13: #{tpu_custom_call.1} parent=1 // pred_fallthru
      _
    // Predicated region
    $region14: #{tpu_custom_call.1} parent=1 // pred_check
      _
    $region15: #{tpu_custom_call.1} parent=1 // pred_check_branch
      %20 = sbr.rel (0) target = $region17
    $region16: #{tpu_custom_call.1} parent=1 // pred_region
      _
    $region17: #{tpu_custom_call.1} parent=1 // pred_fallthru
      _
    // Predicated region
    $region18: #{tpu_custom_call.1} parent=1 // pred_check
      _
    $region19: #{tpu_custom_call.1} parent=1 // pred_check_branch
      %22 = sbr.rel (0) target = $region21
    $region20: #{tpu_custom_call.1} parent=1 // pred_region
      _
    $region21: #{tpu_custom_call.1} parent=1 // pred_fallthru
      _
    // Predicated region
    $region22: #{tpu_custom_call.1} parent=1 // pred_check
      _
    $region23: #{tpu_custom_call.1} parent=1 // pred_check_branch
      %24 = sbr.rel (0) target = $region25
    $region24: #{tpu_custom_call.1} parent=1 // pred_region
      %26 = vsyncadd [#allocation6], 0
      %s27 = sshll.u32 %s5, 4
      %s28 = int_to_ptr.hbm [resolvable:$true] %s27
      %s29 = sshll.u32 [#allocation5], 4
      %s30 = int_to_ptr.vmem [resolvable:$true] %s29
      %35 = dma.hbm_to_vmem [thread:$0]  %s28, 256, %s30, [#allocation6], 128, 128, 8
    $region25: #{tpu_custom_call.1} parent=1 // pred_fallthru
      _
    // Predicated region
    $region26: #{tpu_custom_call.1} parent=1 // pred_check
      _
    $region27: #{tpu_custom_call.1} parent=1 // pred_check_branch
      %37 = sbr.rel (0) target = $region29
    $region28: #{tpu_custom_call.1} parent=1 // pred_region
      _
    $region29: #{tpu_custom_call.1} parent=1 // pred_fallthru
      _
    // Predicated region
    $region30: #{tpu_custom_call.1} parent=1 // pred_check
      _
    $region31: #{tpu_custom_call.1} parent=1 // pred_check_branch
      %39 = sbr.rel (0) target = $region33
    $region32: #{tpu_custom_call.1} parent=1 // pred_region
      %41 = dma.done [#allocation6], 256
    $region33: #{tpu_custom_call.1} parent=1 // pred_fallthru
      _
    %v42 = vld [vmem:[%s0] sm:$0xff]
    %v43 = vld [vmem:[%s0 + $0x8] sm:$0xff]
    %v44 = vld [vmem:[%s0 + $0x10] sm:$0xff]
    %v45 = vld [vmem:[%s0 + $0x18] sm:$0xff]
    %v46 = vld [vmem:[%s0 + $0x20] sm:$0xff]
    %v47 = vld [vmem:[%s0 + $0x28] sm:$0xff]
    %v48 = vld [vmem:[%s0 + $0x30] sm:$0xff]
    %v49 = vld [vmem:[%s0 + $0x38] sm:$0xff]
    %v50 = vld [vmem:[%s1] sm:$0xff]
    %v51 = vld [vmem:[%s1 + $0x8] sm:$0xff]
    %v52 = vld [vmem:[%s3] sm:$0x1]
    %v54 = vperm.slane %v52, 0
    %vm56 = vcmask 130048
    %v58 = vsel %vm56, %v42, 0
    %v61 = vsel %vm56, %v43, 0
    %v64 = vsel %vm56, %v44, 0
    %v67 = vsel %vm56, %v45, 0
    %v70 = vsel %vm56, %v46, 0
    %v73 = vsel %vm56, %v47, 0
    %v76 = vsel %vm56, %v48, 0
    %v79 = vsel %vm56, %v49, 0
    %81 = vmatpush.msra.mxu0 0.0
    %82 = vmatpush.msra.mxu0 0.0
    %83 = vmatpush.msra.mxu0 0.0
    %84 = vmatpush.msra.mxu0 0.0
    %85 = vmatpush.msra.mxu0 0.0
    %86 = vmatpush.msra.mxu0 0.0
    %87 = vmatpush.msra.mxu0 0.0
    %88 = vmatpush.msra.mxu0 0.0
    %89 = vmatpush.msra.mxu0 0.0
    %90 = vmatpush.msra.mxu0 0.0
    %91 = vmatpush.msra.mxu0 0.0
    %92 = vmatpush.msra.mxu0 0.0
    %93 = vmatpush.msra.mxu0 0.0
    %94 = vmatpush.msra.mxu0 0.0
    %95 = vmatpush.msra.mxu0 %v51
    %96 = vmatpush.msra.mxu0 %v50
    %97 = vmatmul.f32.gmra.mxu0 %v58
    %v98 = vpop.f32.mrf.mxu0
    %v99 = vadd.f32 %v54, %v98
    %100 = vmatmul.f32.gmra.mxu0 %v61
    %v101 = vpop.f32.mrf.mxu0
    %v102 = vadd.f32 %v54, %v101
    %103 = vmatmul.f32.gmra.mxu0 %v64
    %v104 = vpop.f32.mrf.mxu0
    %v105 = vadd.f32 %v54, %v104
    %106 = vmatmul.f32.gmra.mxu0 %v67
    %v107 = vpop.f32.mrf.mxu0
    %v108 = vadd.f32 %v54, %v107
    %109 = vmatmul.f32.gmra.mxu0 %v70
    %v110 = vpop.f32.mrf.mxu0
    %v111 = vadd.f32 %v54, %v110
    %112 = vmatmul.f32.gmra.mxu0 %v73
    %v113 = vpop.f32.mrf.mxu0
    %v114 = vadd.f32 %v54, %v113
    %115 = vmatmul.f32.gmra.mxu0 %v76
    %v116 = vpop.f32.mrf.mxu0
    %v117 = vadd.f32 %v54, %v116
    %118 = vmatmul.f32.gmra.mxu0 %v79
    %v119 = vpop.f32.mrf.mxu0
    %v120 = vadd.f32 %v54, %v119
    %121 = vdwg.mxu0
    %122 = vst [vmem:[#allocation2] sm:$0xff] %v99
    %123 = vst [vmem:[#allocation2 + $0x8] sm:$0xff] %v102
    %124 = vst [vmem:[#allocation2 + $0x10] sm:$0xff] %v105
    %125 = vst [vmem:[#allocation2 + $0x18] sm:$0xff] %v108
    %126 = vst [vmem:[#allocation2 + $0x20] sm:$0xff] %v111
    %127 = vst [vmem:[#allocation2 + $0x28] sm:$0xff] %v114
    %128 = vst [vmem:[#allocation2 + $0x30] sm:$0xff] %v117
    %129 = vst [vmem:[#allocation2 + $0x38] sm:$0xff] %v120
    %v130 = vld [vmem:[#allocation2] sm:$0xff]
    %v131 = vld [vmem:[%s2] sm:$0xff]
    %v132 = vld [vmem:[%s2 + $0x8] sm:$0xff]
    %v133 = vld [vmem:[%s2 + $0x10] sm:$0xff]
    %v134 = vld [vmem:[%s2 + $0x18] sm:$0xff]
    %vm135 = vcmask 261120
    %v137 = vsel %vm135, 0.0, 0
    %139 = vmatpush.msra.mxu0 0.0
    %140 = vmatpush.msra.mxu0 0.0
    %141 = vmatpush.msra.mxu0 0.0
    %142 = vmatpush.msra.mxu0 0.0
    %143 = vmatpush.msra.mxu0 0.0
    %144 = vmatpush.msra.mxu0 0.0
    %145 = vmatpush.msra.mxu0 0.0
    %146 = vmatpush.msra.mxu0 0.0
    %147 = vmatpush.msra.mxu0 0.0
    %148 = vmatpush.msra.mxu0 0.0
    %149 = vmatpush.msra.mxu0 0.0
    %150 = vmatpush.msra.mxu0 0.0
    %151 = vmatpush.msra.mxu0 %v134
    %152 = vmatpush.msra.mxu0 %v133
    %153 = vmatpush.msra.mxu0 %v132
    %154 = vmatpush.msra.mxu0 %v131
    %155 = vmatmul.f32.gmra.mxu0 %v137
    %v156 = vpop.f32.mrf.mxu0
    %v157 = vadd.f32 0.0, %v156
    %158 = vdwg.mxu0
    %v159 = vadd.f32 %v130, %v157
    %v160 = vxor.u32 %v159, 2147483648
    %v161 = vmul.f32 %v160, 1.442695
    %v162 = vpow.pop %v161
    %v163 = vadd.f32 %v162, 1.0
    %v164 = vrcp.pop %v163
    %v165 = vmul.f32 %v163, %v164
    %v166 = vsub.f32 1.0, %v165
    %v167 = vmul.f32 %v164, %v166
    %v168 = vadd.f32 %v164, %v167
    %vm169 = vweird.f32 %v163
    %vm170 = vweird.f32 %v164
    %vm171 = vmor %vm169, %vm170
    %v172 = vsel %vm171, %v164, %v168
    %v173 = vand.u32 2147483647, %v163
    %vm174 = vcmp.eq.f32.partialorder %v173, 8.507059e+37
    %v175 = vand.u32 %v163, 2147483648
    %v176 = vor.u32 1.1754944e-38, %v175
    %v177 = vsel %vm174, %v176, %v172
    %v178 = vmul.f32 1.0, %v177
    %v179 = vtanh.pop %v159
    %v180 = vmul.f32 %v178, 0.0
    %182 = vrot.lane.b32.xlu0 %v179, 64
    %v183 = vpop.permute.xlu0 %182
    %v185 = vmul.f32 %v178, %v183
    %187 = vrot.lane.b32.xlu0 %v185, 32
    %v188 = vpop.permute.xlu0 %187
    %v190 = vadd.f32 %v180, %v188
    %v191 = vtanh.pop %v190
    %193 = vrot.lane.b32.xlu0 %v191, 64
    %v194 = vpop.permute.xlu0 %193
    %v196 = vmul.f32 %v178, %v194
    %198 = vrot.lane.b32.xlu0 %v196, 32
    %v199 = vpop.permute.xlu0 %198
    %201 = vst.msk [vmem:[#allocation3] sm:$0xff] %vm135, %v199
    %s202 = scalar_lea.vmem [#allocation2], 8
    %v203 = vld [vmem:[%s202] sm:$0xff]
    %v204 = vld [vmem:[%s2] sm:$0xff]
    %v205 = vld [vmem:[%s2 + $0x8] sm:$0xff]
    %v206 = vld [vmem:[%s2 + $0x10] sm:$0xff]
    %v207 = vld [vmem:[%s2 + $0x18] sm:$0xff]
    %v208 = vsel %vm135, %v199, 0
    %210 = vmatpush.msra.mxu0 0.0
    %211 = vmatpush.msra.mxu0 0.0
    %212 = vmatpush.msra.mxu0 0.0
    %213 = vmatpush.msra.mxu0 0.0
    %214 = vmatpush.msra.mxu0 0.0
    %215 = vmatpush.msra.mxu0 0.0
    %216 = vmatpush.msra.mxu0 0.0
    %217 = vmatpush.msra.mxu0 0.0
    %218 = vmatpush.msra.mxu0 0.0
    %219 = vmatpush.msra.mxu0 0.0
    %220 = vmatpush.msra.mxu0 0.0
    %221 = vmatpush.msra.mxu0 0.0
    %222 = vmatpush.msra.mxu0 %v207
    %223 = vmatpush.msra.mxu0 %v206
    %224 = vmatpush.msra.mxu0 %v205
    %225 = vmatpush.msra.mxu0 %v204
    %226 = vmatmul.f32.gmra.mxu0 %v208
    %v227 = vpop.f32.mrf.mxu0
    %v228 = vadd.f32 0.0, %v227
    %229 = vdwg.mxu0
    %v230 = vadd.f32 %v203, %v228
    %v231 = vxor.u32 %v230, 2147483648
    %v232 = vmul.f32 %v231, 1.442695
    %v233 = vpow.pop %v232
    %v234 = vadd.f32 %v233, 1.0
    %v235 = vrcp.pop %v234
    %v236 = vmul.f32 %v234, %v235
    %v237 = vsub.f32 1.0, %v236
    %v238 = vmul.f32 %v235, %v237
    %v239 = vadd.f32 %v235, %v238
    %vm240 = vweird.f32 %v234
    %vm241 = vweird.f32 %v235
    %vm242 = vmor %vm240, %vm241
    %v243 = vsel %vm242, %v235, %v239
    %v244 = vand.u32 2147483647, %v234
    %vm245 = vcmp.eq.f32.partialorder %v244, 8.507059e+37
    %v246 = vand.u32 %v234, 2147483648
    %v247 = vor.u32 1.1754944e-38, %v246
    %v248 = vsel %vm245, %v247, %v243
    %v249 = vmul.f32 1.0, %v248
    %v250 = vtanh.pop %v230
    %v251 = vmul.f32 %v249, %v190
    %253 = vrot.lane.b32.xlu0 %v250, 64
    %v254 = vpop.permute.xlu0 %253
    %v256 = vmul.f32 %v249, %v254
    %258 = vrot.lane.b32.xlu0 %v256, 32
    %v259 = vpop.permute.xlu0 %258
    %v261 = vadd.f32 %v251, %v259
    %v262 = vtanh.pop %v261
    %264 = vrot.lane.b32.xlu0 %v262, 64
    %v265 = vpop.permute.xlu0 %264
    %v267 = vmul.f32 %v249, %v265
    %269 = vrot.lane.b32.xlu0 %v267, 32
    %v270 = vpop.permute.xlu0 %269
    %s272 = scalar_lea.vmem [#allocation3], 8
    %273 = vst.msk [vmem:[%s272] sm:$0xff] %vm135, %v270
    %s274 = scalar_lea.vmem [#allocation2], 16
    %v275 = vld [vmem:[%s274] sm:$0xff]
    %v276 = vld [vmem:[%s2] sm:$0xff]
    %v277 = vld [vmem:[%s2 + $0x8] sm:$0xff]
    %v278 = vld [vmem:[%s2 + $0x10] sm:$0xff]
    %v279 = vld [vmem:[%s2 + $0x18] sm:$0xff]
    %v280 = vsel %vm135, %v270, 0
    %282 = vmatpush.msra.mxu0 0.0
    %283 = vmatpush.msra.mxu0 0.0
    %284 = vmatpush.msra.mxu0 0.0
    %285 = vmatpush.msra.mxu0 0.0
    %286 = vmatpush.msra.mxu0 0.0
    %287 = vmatpush.msra.mxu0 0.0
    %288 = vmatpush.msra.mxu0 0.0
    %289 = vmatpush.msra.mxu0 0.0
    %290 = vmatpush.msra.mxu0 0.0
    %291 = vmatpush.msra.mxu0 0.0
    %292 = vmatpush.msra.mxu0 0.0
    %293 = vmatpush.msra.mxu0 0.0
    %294 = vmatpush.msra.mxu0 %v279
    %295 = vmatpush.msra.mxu0 %v278
    %296 = vmatpush.msra.mxu0 %v277
    %297 = vmatpush.msra.mxu0 %v276
    %298 = vmatmul.f32.gmra.mxu0 %v280
    %v299 = vpop.f32.mrf.mxu0
    %v300 = vadd.f32 0.0, %v299
    %301 = vdwg.mxu0
    %v302 = vadd.f32 %v275, %v300
    %v303 = vxor.u32 %v302, 2147483648
    %v304 = vmul.f32 %v303, 1.442695
    %v305 = vpow.pop %v304
    %v306 = vadd.f32 %v305, 1.0
    %v307 = vrcp.pop %v306
    %v308 = vmul.f32 %v306, %v307
    %v309 = vsub.f32 1.0, %v308
    %v310 = vmul.f32 %v307, %v309
    %v311 = vadd.f32 %v307, %v310
    %vm312 = vweird.f32 %v306
    %vm313 = vweird.f32 %v307
    %vm314 = vmor %vm312, %vm313
    %v315 = vsel %vm314, %v307, %v311
    %v316 = vand.u32 2147483647, %v306
    %vm317 = vcmp.eq.f32.partialorder %v316, 8.507059e+37
    %v318 = vand.u32 %v306, 2147483648
    %v319 = vor.u32 1.1754944e-38, %v318
    %v320 = vsel %vm317, %v319, %v315
    %v321 = vmul.f32 1.0, %v320
    %v322 = vtanh.pop %v302
    %v323 = vmul.f32 %v321, %v261
    %325 = vrot.lane.b32.xlu0 %v322, 64
    %v326 = vpop.permute.xlu0 %325
    %v328 = vmul.f32 %v321, %v326
    %330 = vrot.lane.b32.xlu0 %v328, 32
    %v331 = vpop.permute.xlu0 %330
    %v333 = vadd.f32 %v323, %v331
    %v334 = vtanh.pop %v333
    %336 = vrot.lane.b32.xlu0 %v334, 64
    %v337 = vpop.permute.xlu0 %336
    %v339 = vmul.f32 %v321, %v337
    %341 = vrot.lane.b32.xlu0 %v339, 32
    %v342 = vpop.permute.xlu0 %341
    %s344 = scalar_lea.vmem [#allocation3], 16
    %345 = vst.msk [vmem:[%s344] sm:$0xff] %vm135, %v342
    %s346 = scalar_lea.vmem [#allocation2], 24
    %v347 = vld [vmem:[%s346] sm:$0xff]
    %v348 = vld [vmem:[%s2] sm:$0xff]
    %v349 = vld [vmem:[%s2 + $0x8] sm:$0xff]
    %v350 = vld [vmem:[%s2 + $0x10] sm:$0xff]
    %v351 = vld [vmem:[%s2 + $0x18] sm:$0xff]
    %v352 = vsel %vm135, %v342, 0
    %354 = vmatpush.msra.mxu0 0.0
    %355 = vmatpush.msra.mxu0 0.0
    %356 = vmatpush.msra.mxu0 0.0
    %357 = vmatpush.msra.mxu0 0.0
    %358 = vmatpush.msra.mxu0 0.0
    %359 = vmatpush.msra.mxu0 0.0
    %360 = vmatpush.msra.mxu0 0.0
    %361 = vmatpush.msra.mxu0 0.0
    %362 = vmatpush.msra.mxu0 0.0
    %363 = vmatpush.msra.mxu0 0.0
    %364 = vmatpush.msra.mxu0 0.0
    %365 = vmatpush.msra.mxu0 0.0
    %366 = vmatpush.msra.mxu0 %v351
    %367 = vmatpush.msra.mxu0 %v350
    %368 = vmatpush.msra.mxu0 %v349
    %369 = vmatpush.msra.mxu0 %v348
    %370 = vmatmul.f32.gmra.mxu0 %v352
    %v371 = vpop.f32.mrf.mxu0
    %v372 = vadd.f32 0.0, %v371
    %373 = vdwg.mxu0
    %v374 = vadd.f32 %v347, %v372
    %v375 = vxor.u32 %v374, 2147483648
    %v376 = vmul.f32 %v375, 1.442695
    %v377 = vpow.pop %v376
    %v378 = vadd.f32 %v377, 1.0
    %v379 = vrcp.pop %v378
    %v380 = vmul.f32 %v378, %v379
    %v381 = vsub.f32 1.0, %v380
    %v382 = vmul.f32 %v379, %v381
    %v383 = vadd.f32 %v379, %v382
    %vm384 = vweird.f32 %v378
    %vm385 = vweird.f32 %v379
    %vm386 = vmor %vm384, %vm385
    %v387 = vsel %vm386, %v379, %v383
    %v388 = vand.u32 2147483647, %v378
    %vm389 = vcmp.eq.f32.partialorder %v388, 8.507059e+37
    %v390 = vand.u32 %v378, 2147483648
    %v391 = vor.u32 1.1754944e-38, %v390
    %v392 = vsel %vm389, %v391, %v387
    %v393 = vmul.f32 1.0, %v392
    %v394 = vtanh.pop %v374
    %v395 = vmul.f32 %v393, %v333
    %397 = vrot.lane.b32.xlu0 %v394, 64
    %v398 = vpop.permute.xlu0 %397
    %v400 = vmul.f32 %v393, %v398
    %402 = vrot.lane.b32.xlu0 %v400, 32
    %v403 = vpop.permute.xlu0 %402
    %v405 = vadd.f32 %v395, %v403
    %v406 = vtanh.pop %v405
    %408 = vrot.lane.b32.xlu0 %v406, 64
    %v409 = vpop.permute.xlu0 %408
    %v411 = vmul.f32 %v393, %v409
    %413 = vrot.lane.b32.xlu0 %v411, 32
    %v414 = vpop.permute.xlu0 %413
    %s416 = scalar_lea.vmem [#allocation3], 24
    %417 = vst.msk [vmem:[%s416] sm:$0xff] %vm135, %v414
    %s418 = scalar_lea.vmem [#allocation2], 32
    %v419 = vld [vmem:[%s418] sm:$0xff]
    %v420 = vld [vmem:[%s2] sm:$0xff]
    %v421 = vld [vmem:[%s2 + $0x8] sm:$0xff]
    %v422 = vld [vmem:[%s2 + $0x10] sm:$0xff]
    %v423 = vld [vmem:[%s2 + $0x18] sm:$0xff]
    %v424 = vsel %vm135, %v414, 0
    %426 = vmatpush.msra.mxu0 0.0
    %427 = vmatpush.msra.mxu0 0.0
    %428 = vmatpush.msra.mxu0 0.0
    %429 = vmatpush.msra.mxu0 0.0
    %430 = vmatpush.msra.mxu0 0.0
    %431 = vmatpush.msra.mxu0 0.0
    %432 = vmatpush.msra.mxu0 0.0
    %433 = vmatpush.msra.mxu0 0.0
    %434 = vmatpush.msra.mxu0 0.0
    %435 = vmatpush.msra.mxu0 0.0
    %436 = vmatpush.msra.mxu0 0.0
    %437 = vmatpush.msra.mxu0 0.0
    %438 = vmatpush.msra.mxu0 %v423
    %439 = vmatpush.msra.mxu0 %v422
    %440 = vmatpush.msra.mxu0 %v421
    %441 = vmatpush.msra.mxu0 %v420
    %442 = vmatmul.f32.gmra.mxu0 %v424
    %v443 = vpop.f32.mrf.mxu0
    %v444 = vadd.f32 0.0, %v443
    %445 = vdwg.mxu0
    %v446 = vadd.f32 %v419, %v444
    %v447 = vxor.u32 %v446, 2147483648
    %v448 = vmul.f32 %v447, 1.442695
    %v449 = vpow.pop %v448
    %v450 = vadd.f32 %v449, 1.0
    %v451 = vrcp.pop %v450
    %v452 = vmul.f32 %v450, %v451
    %v453 = vsub.f32 1.0, %v452
    %v454 = vmul.f32 %v451, %v453
    %v455 = vadd.f32 %v451, %v454
    %vm456 = vweird.f32 %v450
    %vm457 = vweird.f32 %v451
    %vm458 = vmor %vm456, %vm457
    %v459 = vsel %vm458, %v451, %v455
    %v460 = vand.u32 2147483647, %v450
    %vm461 = vcmp.eq.f32.partialorder %v460, 8.507059e+37
    %v462 = vand.u32 %v450, 2147483648
    %v463 = vor.u32 1.1754944e-38, %v462
    %v464 = vsel %vm461, %v463, %v459
    %v465 = vmul.f32 1.0, %v464
    %v466 = vtanh.pop %v446
    %v467 = vmul.f32 %v465, %v405
    %469 = vrot.lane.b32.xlu0 %v466, 64
    %v470 = vpop.permute.xlu0 %469
    %v472 = vmul.f32 %v465, %v470
    %474 = vrot.lane.b32.xlu0 %v472, 32
    %v475 = vpop.permute.xlu0 %474
    %v477 = vadd.f32 %v467, %v475
    %v478 = vtanh.pop %v477
    %480 = vrot.lane.b32.xlu0 %v478, 64
    %v481 = vpop.permute.xlu0 %480
    %v483 = vmul.f32 %v465, %v481
    %485 = vrot.lane.b32.xlu0 %v483, 32
    %v486 = vpop.permute.xlu0 %485
    %s488 = scalar_lea.vmem [#allocation3], 32
    %489 = vst.msk [vmem:[%s488] sm:$0xff] %vm135, %v486
    %s490 = scalar_lea.vmem [#allocation2], 40
    %v491 = vld [vmem:[%s490] sm:$0xff]
    %v492 = vld [vmem:[%s2] sm:$0xff]
    %v493 = vld [vmem:[%s2 + $0x8] sm:$0xff]
    %v494 = vld [vmem:[%s2 + $0x10] sm:$0xff]
    %v495 = vld [vmem:[%s2 + $0x18] sm:$0xff]
    %v496 = vsel %vm135, %v486, 0
    %498 = vmatpush.msra.mxu0 0.0
    %499 = vmatpush.msra.mxu0 0.0
    %500 = vmatpush.msra.mxu0 0.0
    %501 = vmatpush.msra.mxu0 0.0
    %502 = vmatpush.msra.mxu0 0.0
    %503 = vmatpush.msra.mxu0 0.0
    %504 = vmatpush.msra.mxu0 0.0
    %505 = vmatpush.msra.mxu0 0.0
    %506 = vmatpush.msra.mxu0 0.0
    %507 = vmatpush.msra.mxu0 0.0
    %508 = vmatpush.msra.mxu0 0.0
    %509 = vmatpush.msra.mxu0 0.0
    %510 = vmatpush.msra.mxu0 %v495
    %511 = vmatpush.msra.mxu0 %v494
    %512 = vmatpush.msra.mxu0 %v493
    %513 = vmatpush.msra.mxu0 %v492
    %514 = vmatmul.f32.gmra.mxu0 %v496
    %v515 = vpop.f32.mrf.mxu0
    %v516 = vadd.f32 0.0, %v515
    %517 = vdwg.mxu0
    %v518 = vadd.f32 %v491, %v516
    %v519 = vxor.u32 %v518, 2147483648
    %v520 = vmul.f32 %v519, 1.442695
    %v521 = vpow.pop %v520
    %v522 = vadd.f32 %v521, 1.0
    %v523 = vrcp.pop %v522
    %v524 = vmul.f32 %v522, %v523
    %v525 = vsub.f32 1.0, %v524
    %v526 = vmul.f32 %v523, %v525
    %v527 = vadd.f32 %v523, %v526
    %vm528 = vweird.f32 %v522
    %vm529 = vweird.f32 %v523
    %vm530 = vmor %vm528, %vm529
    %v531 = vsel %vm530, %v523, %v527
    %v532 = vand.u32 2147483647, %v522
    %vm533 = vcmp.eq.f32.partialorder %v532, 8.507059e+37
    %v534 = vand.u32 %v522, 2147483648
    %v535 = vor.u32 1.1754944e-38, %v534
    %v536 = vsel %vm533, %v535, %v531
    %v537 = vmul.f32 1.0, %v536
    %v538 = vtanh.pop %v518
    %v539 = vmul.f32 %v537, %v477
    %541 = vrot.lane.b32.xlu0 %v538, 64
    %v542 = vpop.permute.xlu0 %541
    %v544 = vmul.f32 %v537, %v542
    %546 = vrot.lane.b32.xlu0 %v544, 32
    %v547 = vpop.permute.xlu0 %546
    %v549 = vadd.f32 %v539, %v547
    %v550 = vtanh.pop %v549
    %552 = vrot.lane.b32.xlu0 %v550, 64
    %v553 = vpop.permute.xlu0 %552
    %v555 = vmul.f32 %v537, %v553
    %557 = vrot.lane.b32.xlu0 %v555, 32
    %v558 = vpop.permute.xlu0 %557
    %s560 = scalar_lea.vmem [#allocation3], 40
    %561 = vst.msk [vmem:[%s560] sm:$0xff] %vm135, %v558
    %s562 = scalar_lea.vmem [#allocation2], 48
    %v563 = vld [vmem:[%s562] sm:$0xff]
    %v564 = vld [vmem:[%s2] sm:$0xff]
    %v565 = vld [vmem:[%s2 + $0x8] sm:$0xff]
    %v566 = vld [vmem:[%s2 + $0x10] sm:$0xff]
    %v567 = vld [vmem:[%s2 + $0x18] sm:$0xff]
    %v568 = vsel %vm135, %v558, 0
    %570 = vmatpush.msra.mxu0 0.0
    %571 = vmatpush.msra.mxu0 0.0
    %572 = vmatpush.msra.mxu0 0.0
    %573 = vmatpush.msra.mxu0 0.0
    %574 = vmatpush.msra.mxu0 0.0
    %575 = vmatpush.msra.mxu0 0.0
    %576 = vmatpush.msra.mxu0 0.0
    %577 = vmatpush.msra.mxu0 0.0
    %578 = vmatpush.msra.mxu0 0.0
    %579 = vmatpush.msra.mxu0 0.0
    %580 = vmatpush.msra.mxu0 0.0
    %581 = vmatpush.msra.mxu0 0.0
    %582 = vmatpush.msra.mxu0 %v567
    %583 = vmatpush.msra.mxu0 %v566
    %584 = vmatpush.msra.mxu0 %v565
    %585 = vmatpush.msra.mxu0 %v564
    %586 = vmatmul.f32.gmra.mxu0 %v568
    %v587 = vpop.f32.mrf.mxu0
    %v588 = vadd.f32 0.0, %v587
    %589 = vdwg.mxu0
    %v590 = vadd.f32 %v563, %v588
    %v591 = vxor.u32 %v590, 2147483648
    %v592 = vmul.f32 %v591, 1.442695
    %v593 = vpow.pop %v592
    %v594 = vadd.f32 %v593, 1.0
    %v595 = vrcp.pop %v594
    %v596 = vmul.f32 %v594, %v595
    %v597 = vsub.f32 1.0, %v596
    %v598 = vmul.f32 %v595, %v597
    %v599 = vadd.f32 %v595, %v598
    %vm600 = vweird.f32 %v594
    %vm601 = vweird.f32 %v595
    %vm602 = vmor %vm600, %vm601
    %v603 = vsel %vm602, %v595, %v599
    %v604 = vand.u32 2147483647, %v594
    %vm605 = vcmp.eq.f32.partialorder %v604, 8.507059e+37
    %v606 = vand.u32 %v594, 2147483648
    %v607 = vor.u32 1.1754944e-38, %v606
    %v608 = vsel %vm605, %v607, %v603
    %v609 = vmul.f32 1.0, %v608
    %v610 = vtanh.pop %v590
    %v611 = vmul.f32 %v609, %v549
    %613 = vrot.lane.b32.xlu0 %v610, 64
    %v614 = vpop.permute.xlu0 %613
    %v616 = vmul.f32 %v609, %v614
    %618 = vrot.lane.b32.xlu0 %v616, 32
    %v619 = vpop.permute.xlu0 %618
    %v621 = vadd.f32 %v611, %v619
    %v622 = vtanh.pop %v621
    %624 = vrot.lane.b32.xlu0 %v622, 64
    %v625 = vpop.permute.xlu0 %624
    %v627 = vmul.f32 %v609, %v625
    %629 = vrot.lane.b32.xlu0 %v627, 32
    %v630 = vpop.permute.xlu0 %629
    %s632 = scalar_lea.vmem [#allocation3], 48
    %633 = vst.msk [vmem:[%s632] sm:$0xff] %vm135, %v630
    %s634 = scalar_lea.vmem [#allocation2], 56
    %v635 = vld [vmem:[%s634] sm:$0xff]
    %v636 = vld [vmem:[%s2] sm:$0xff]
    %v637 = vld [vmem:[%s2 + $0x8] sm:$0xff]
    %v638 = vld [vmem:[%s2 + $0x10] sm:$0xff]
    %v639 = vld [vmem:[%s2 + $0x18] sm:$0xff]
    %v640 = vsel %vm135, %v630, 0
    %642 = vmatpush.msra.mxu0 0.0
    %643 = vmatpush.msra.mxu0 0.0
    %644 = vmatpush.msra.mxu0 0.0
    %645 = vmatpush.msra.mxu0 0.0
    %646 = vmatpush.msra.mxu0 0.0
    %647 = vmatpush.msra.mxu0 0.0
    %648 = vmatpush.msra.mxu0 0.0
    %649 = vmatpush.msra.mxu0 0.0
    %650 = vmatpush.msra.mxu0 0.0
    %651 = vmatpush.msra.mxu0 0.0
    %652 = vmatpush.msra.mxu0 0.0
    %653 = vmatpush.msra.mxu0 0.0
    %654 = vmatpush.msra.mxu0 %v639
    %655 = vmatpush.msra.mxu0 %v638
    %656 = vmatpush.msra.mxu0 %v637
    %657 = vmatpush.msra.mxu0 %v636
    %658 = vmatmul.f32.gmra.mxu0 %v640
    %v659 = vpop.f32.mrf.mxu0
    %v660 = vadd.f32 0.0, %v659
    %661 = vdwg.mxu0
    %v662 = vadd.f32 %v635, %v660
    %v663 = vxor.u32 %v662, 2147483648
    %v664 = vmul.f32 %v663, 1.442695
    %v665 = vpow.pop %v664
    %v666 = vadd.f32 %v665, 1.0
    %v667 = vrcp.pop %v666
    %v668 = vmul.f32 %v666, %v667
    %v669 = vsub.f32 1.0, %v668
    %v670 = vmul.f32 %v667, %v669
    %v671 = vadd.f32 %v667, %v670
    %vm672 = vweird.f32 %v666
    %vm673 = vweird.f32 %v667
    %vm674 = vmor %vm672, %vm673
    %v675 = vsel %vm674, %v667, %v671
    %v676 = vand.u32 2147483647, %v666
    %vm677 = vcmp.eq.f32.partialorder %v676, 8.507059e+37
    %v678 = vand.u32 %v666, 2147483648
    %v679 = vor.u32 1.1754944e-38, %v678
    %v680 = vsel %vm677, %v679, %v675
    %v681 = vmul.f32 1.0, %v680
    %v682 = vtanh.pop %v662
    %v683 = vmul.f32 %v681, %v621
    %685 = vrot.lane.b32.xlu0 %v682, 64
    %v686 = vpop.permute.xlu0 %685
    %v688 = vmul.f32 %v681, %v686
    %690 = vrot.lane.b32.xlu0 %v688, 32
    %v691 = vpop.permute.xlu0 %690
    %v693 = vadd.f32 %v683, %v691
    %v694 = vtanh.pop %v693
    %696 = vrot.lane.b32.xlu0 %v694, 64
    %v697 = vpop.permute.xlu0 %696
    %v699 = vmul.f32 %v681, %v697
    %701 = vrot.lane.b32.xlu0 %v699, 32
    %v702 = vpop.permute.xlu0 %701
    %s704 = scalar_lea.vmem [#allocation3], 56
    %705 = vst.msk [vmem:[%s704] sm:$0xff] %vm135, %v702
    %v706 = vld [vmem:[#allocation3] sm:$0xff]
    %v707 = vld [vmem:[#allocation3 + $0x8] sm:$0xff]
    %v708 = vld [vmem:[#allocation3 + $0x10] sm:$0xff]
    %v709 = vld [vmem:[#allocation3 + $0x18] sm:$0xff]
    %v710 = vld [vmem:[#allocation3 + $0x20] sm:$0xff]
    %v711 = vld [vmem:[#allocation3 + $0x28] sm:$0xff]
    %v712 = vld [vmem:[#allocation3 + $0x30] sm:$0xff]
    %v713 = vld [vmem:[#allocation3 + $0x38] sm:$0xff]
    %v714 = vld [vmem:[%s4] sm:$0xff]
    %v715 = vld [vmem:[%s4 + $0x8] sm:$0xff]
    %v716 = vld [vmem:[%s4 + $0x10] sm:$0xff]
    %v717 = vld [vmem:[%s4 + $0x18] sm:$0xff]
    %v718 = vld [vmem:[%s6] sm:$0x1]
    %v720 = vperm.slane %v718, 0
    %v723 = vsel %vm135, %v706, 0
    %v726 = vsel %vm135, %v707, 0
    %v729 = vsel %vm135, %v708, 0
    %v732 = vsel %vm135, %v709, 0
    %v735 = vsel %vm135, %v710, 0
    %v738 = vsel %vm135, %v711, 0
    %v741 = vsel %vm135, %v712, 0
    %v744 = vsel %vm135, %v713, 0
    %746 = vmatpush.msra.mxu0 0.0
    %747 = vmatpush.msra.mxu0 0.0
    %748 = vmatpush.msra.mxu0 0.0
    %749 = vmatpush.msra.mxu0 0.0
    %750 = vmatpush.msra.mxu0 0.0
    %751 = vmatpush.msra.mxu0 0.0
    %752 = vmatpush.msra.mxu0 0.0
    %753 = vmatpush.msra.mxu0 0.0
    %754 = vmatpush.msra.mxu0 0.0
    %755 = vmatpush.msra.mxu0 0.0
    %756 = vmatpush.msra.mxu0 0.0
    %757 = vmatpush.msra.mxu0 0.0
    %758 = vmatpush.msra.mxu0 %v717
    %759 = vmatpush.msra.mxu0 %v716
    %760 = vmatpush.msra.mxu0 %v715
    %761 = vmatpush.msra.mxu0 %v714
    %762 = vmatmul.f32.gmra.mxu0 %v723
    %v763 = vpop.f32.mrf.mxu0
    %v764 = vadd.f32 %v720, %v763
    %765 = vmatmul.f32.gmra.mxu0 %v726
    %v766 = vpop.f32.mrf.mxu0
    %v767 = vadd.f32 %v720, %v766
    %768 = vmatmul.f32.gmra.mxu0 %v729
    %v769 = vpop.f32.mrf.mxu0
    %v770 = vadd.f32 %v720, %v769
    %771 = vmatmul.f32.gmra.mxu0 %v732
    %v772 = vpop.f32.mrf.mxu0
    %v773 = vadd.f32 %v720, %v772
    %774 = vmatmul.f32.gmra.mxu0 %v735
    %v775 = vpop.f32.mrf.mxu0
    %v776 = vadd.f32 %v720, %v775
    %777 = vmatmul.f32.gmra.mxu0 %v738
    %v778 = vpop.f32.mrf.mxu0
    %v779 = vadd.f32 %v720, %v778
    %780 = vmatmul.f32.gmra.mxu0 %v741
    %v781 = vpop.f32.mrf.mxu0
    %v782 = vadd.f32 %v720, %v781
    %783 = vmatmul.f32.gmra.mxu0 %v744
    %v784 = vpop.f32.mrf.mxu0
    %v785 = vadd.f32 %v720, %v784
    %786 = vdwg.mxu0
    %vm787 = vcmask 523264
    %788 = vst.msk [vmem:[#allocation4] sm:$0xff] %vm787, %v764
    %789 = vst.msk [vmem:[#allocation4 + $0x8] sm:$0xff] %vm787, %v767
    %790 = vst.msk [vmem:[#allocation4 + $0x10] sm:$0xff] %vm787, %v770
    %791 = vst.msk [vmem:[#allocation4 + $0x18] sm:$0xff] %vm787, %v773
    %792 = vst.msk [vmem:[#allocation4 + $0x20] sm:$0xff] %vm787, %v776
    %793 = vst.msk [vmem:[#allocation4 + $0x28] sm:$0xff] %vm787, %v779
    %794 = vst.msk [vmem:[#allocation4 + $0x30] sm:$0xff] %vm787, %v782
    %795 = vst.msk [vmem:[#allocation4 + $0x38] sm:$0xff] %vm787, %v785
    %v796 = vld [vmem:[#allocation4] sm:$0xff]
    %v797 = vld [vmem:[#allocation5] sm:$0xff]
    %v798 = vld [vmem:[#allocation5 + $0x8] sm:$0xff]
    %v799 = vsel %vm56, 0.0, 0
    %801 = vmatpush.msra.mxu0 0.0
    %802 = vmatpush.msra.mxu0 0.0
    %803 = vmatpush.msra.mxu0 0.0
    %804 = vmatpush.msra.mxu0 0.0
    %805 = vmatpush.msra.mxu0 0.0
    %806 = vmatpush.msra.mxu0 0.0
    %807 = vmatpush.msra.mxu0 0.0
    %808 = vmatpush.msra.mxu0 0.0
    %809 = vmatpush.msra.mxu0 0.0
    %810 = vmatpush.msra.mxu0 0.0
    %811 = vmatpush.msra.mxu0 0.0
    %812 = vmatpush.msra.mxu0 0.0
    %813 = vmatpush.msra.mxu0 0.0
    %814 = vmatpush.msra.mxu0 0.0
    %815 = vmatpush.msra.mxu0 %v798
    %816 = vmatpush.msra.mxu0 %v797
    %817 = vmatmul.f32.gmra.mxu0 %v799
    %v818 = vpop.f32.mrf.mxu0
    %v819 = vadd.f32 0.0, %v818
    %820 = vdwg.mxu0
    %v821 = vadd.f32 %v796, %v819
    %v822 = vxor.u32 %v821, 2147483648
    %v823 = vmul.f32 %v822, 1.442695
    %v824 = vpow.pop %v823
    %v825 = vadd.f32 %v824, 1.0
    %v826 = vrcp.pop %v825
    %v827 = vmul.f32 %v825, %v826
    %v828 = vsub.f32 1.0, %v827
    %v829 = vmul.f32 %v826, %v828
    %v830 = vadd.f32 %v826, %v829
    %vm831 = vweird.f32 %v825
    %vm832 = vweird.f32 %v826
    %vm833 = vmor %vm831, %vm832
    %v834 = vsel %vm833, %v826, %v830
    %v835 = vand.u32 2147483647, %v825
    %vm836 = vcmp.eq.f32.partialorder %v835, 8.507059e+37
    %v837 = vand.u32 %v825, 2147483648
    %v838 = vor.u32 1.1754944e-38, %v837
    %v839 = vsel %vm836, %v838, %v834
    %v840 = vmul.f32 1.0, %v839
    %v841 = vtanh.pop %v821
    %v842 = vmul.f32 %v840, 0.0
    %844 = vrot.lane.b32.xlu0 %v841, 96
    %v845 = vpop.permute.xlu0 %844
    %v847 = vmul.f32 %v840, %v845
    %849 = vrot.lane.b32.xlu0 %v847, 16
    %v850 = vpop.permute.xlu0 %849
    %v852 = vadd.f32 %v842, %v850
    %v853 = vtanh.pop %v852
    %855 = vrot.lane.b32.xlu0 %v853, 32
    %v856 = vpop.permute.xlu0 %855
    %v858 = vmul.f32 %v840, %v856
    %860 = vrot.lane.b32.xlu0 %v858, 80
    %v861 = vpop.permute.xlu0 %860
    %863 = vst.msk [vmem:[%s7] sm:$0xff] %vm56, %v861
    %s864 = scalar_lea.vmem [#allocation4], 8
    %v865 = vld [vmem:[%s864] sm:$0xff]
    %v866 = vld [vmem:[#allocation5] sm:$0xff]
    %v867 = vld [vmem:[#allocation5 + $0x8] sm:$0xff]
    %v868 = vsel %vm56, %v861, 0
    %870 = vmatpush.msra.mxu0 0.0
    %871 = vmatpush.msra.mxu0 0.0
    %872 = vmatpush.msra.mxu0 0.0
    %873 = vmatpush.msra.mxu0 0.0
    %874 = vmatpush.msra.mxu0 0.0
    %875 = vmatpush.msra.mxu0 0.0
    %876 = vmatpush.msra.mxu0 0.0
    %877 = vmatpush.msra.mxu0 0.0
    %878 = vmatpush.msra.mxu0 0.0
    %879 = vmatpush.msra.mxu0 0.0
    %880 = vmatpush.msra.mxu0 0.0
    %881 = vmatpush.msra.mxu0 0.0
    %882 = vmatpush.msra.mxu0 0.0
    %883 = vmatpush.msra.mxu0 0.0
    %884 = vmatpush.msra.mxu0 %v867
    %885 = vmatpush.msra.mxu0 %v866
    %886 = vmatmul.f32.gmra.mxu0 %v868
    %v887 = vpop.f32.mrf.mxu0
    %v888 = vadd.f32 0.0, %v887
    %889 = vdwg.mxu0
    %v890 = vadd.f32 %v865, %v888
    %v891 = vxor.u32 %v890, 2147483648
    %v892 = vmul.f32 %v891, 1.442695
    %v893 = vpow.pop %v892
    %v894 = vadd.f32 %v893, 1.0
    %v895 = vrcp.pop %v894
    %v896 = vmul.f32 %v894, %v895
    %v897 = vsub.f32 1.0, %v896
    %v898 = vmul.f32 %v895, %v897
    %v899 = vadd.f32 %v895, %v898
    %vm900 = vweird.f32 %v894
    %vm901 = vweird.f32 %v895
    %vm902 = vmor %vm900, %vm901
    %v903 = vsel %vm902, %v895, %v899
    %v904 = vand.u32 2147483647, %v894
    %vm905 = vcmp.eq.f32.partialorder %v904, 8.507059e+37
    %v906 = vand.u32 %v894, 2147483648
    %v907 = vor.u32 1.1754944e-38, %v906
    %v908 = vsel %vm905, %v907, %v903
    %v909 = vmul.f32 1.0, %v908
    %v910 = vtanh.pop %v890
    %v911 = vmul.f32 %v909, %v852
    %913 = vrot.lane.b32.xlu0 %v910, 96
    %v914 = vpop.permute.xlu0 %913
    %v916 = vmul.f32 %v909, %v914
    %918 = vrot.lane.b32.xlu0 %v916, 16
    %v919 = vpop.permute.xlu0 %918
    %v921 = vadd.f32 %v911, %v919
    %v922 = vtanh.pop %v921
    %924 = vrot.lane.b32.xlu0 %v922, 32
    %v925 = vpop.permute.xlu0 %924
    %v927 = vmul.f32 %v909, %v925
    %929 = vrot.lane.b32.xlu0 %v927, 80
    %v930 = vpop.permute.xlu0 %929
    %s932 = scalar_lea.vmem %s7, 8
    %933 = vst.msk [vmem:[%s932] sm:$0xff] %vm56, %v930
    %s934 = scalar_lea.vmem [#allocation4], 16
    %v935 = vld [vmem:[%s934] sm:$0xff]
    %v936 = vld [vmem:[#allocation5] sm:$0xff]
    %v937 = vld [vmem:[#allocation5 + $0x8] sm:$0xff]
    %v938 = vsel %vm56, %v930, 0
    %940 = vmatpush.msra.mxu0 0.0
    %941 = vmatpush.msra.mxu0 0.0
    %942 = vmatpush.msra.mxu0 0.0
    %943 = vmatpush.msra.mxu0 0.0
    %944 = vmatpush.msra.mxu0 0.0
    %945 = vmatpush.msra.mxu0 0.0
    %946 = vmatpush.msra.mxu0 0.0
    %947 = vmatpush.msra.mxu0 0.0
    %948 = vmatpush.msra.mxu0 0.0
    %949 = vmatpush.msra.mxu0 0.0
    %950 = vmatpush.msra.mxu0 0.0
    %951 = vmatpush.msra.mxu0 0.0
    %952 = vmatpush.msra.mxu0 0.0
    %953 = vmatpush.msra.mxu0 0.0
    %954 = vmatpush.msra.mxu0 %v937
    %955 = vmatpush.msra.mxu0 %v936
    %956 = vmatmul.f32.gmra.mxu0 %v938
    %v957 = vpop.f32.mrf.mxu0
    %v958 = vadd.f32 0.0, %v957
    %959 = vdwg.mxu0
    %v960 = vadd.f32 %v935, %v958
    %v961 = vxor.u32 %v960, 2147483648
    %v962 = vmul.f32 %v961, 1.442695
    %v963 = vpow.pop %v962
    %v964 = vadd.f32 %v963, 1.0
    %v965 = vrcp.pop %v964
    %v966 = vmul.f32 %v964, %v965
    %v967 = vsub.f32 1.0, %v966
    %v968 = vmul.f32 %v965, %v967
    %v969 = vadd.f32 %v965, %v968
    %vm970 = vweird.f32 %v964
    %vm971 = vweird.f32 %v965
    %vm972 = vmor %vm970, %vm971
    %v973 = vsel %vm972, %v965, %v969
    %v974 = vand.u32 2147483647, %v964
    %vm975 = vcmp.eq.f32.partialorder %v974, 8.507059e+37
    %v976 = vand.u32 %v964, 2147483648
    %v977 = vor.u32 1.1754944e-38, %v976
    %v978 = vsel %vm975, %v977, %v973
    %v979 = vmul.f32 1.0, %v978
    %v980 = vtanh.pop %v960
    %v981 = vmul.f32 %v979, %v921
    %983 = vrot.lane.b32.xlu0 %v980, 96
    %v984 = vpop.permute.xlu0 %983
    %v986 = vmul.f32 %v979, %v984
    %988 = vrot.lane.b32.xlu0 %v986, 16
    %v989 = vpop.permute.xlu0 %988
    %v991 = vadd.f32 %v981, %v989
    %v992 = vtanh.pop %v991
    %994 = vrot.lane.b32.xlu0 %v992, 32
    %v995 = vpop.permute.xlu0 %994
    %v997 = vmul.f32 %v979, %v995
    %999 = vrot.lane.b32.xlu0 %v997, 80
    %v1000 = vpop.permute.xlu0 %999
    %s1002 = scalar_lea.vmem %s7, 16
    %1003 = vst.msk [vmem:[%s1002] sm:$0xff] %vm56, %v1000
    %s1004 = scalar_lea.vmem [#allocation4], 24
    %v1005 = vld [vmem:[%s1004] sm:$0xff]
    %v1006 = vld [vmem:[#allocation5] sm:$0xff]
    %v1007 = vld [vmem:[#allocation5 + $0x8] sm:$0xff]
    %v1008 = vsel %vm56, %v1000, 0
    %1010 = vmatpush.msra.mxu0 0.0
    %1011 = vmatpush.msra.mxu0 0.0
    %1012 = vmatpush.msra.mxu0 0.0
    %1013 = vmatpush.msra.mxu0 0.0
    %1014 = vmatpush.msra.mxu0 0.0
    %1015 = vmatpush.msra.mxu0 0.0
    %1016 = vmatpush.msra.mxu0 0.0
    %1017 = vmatpush.msra.mxu0 0.0
    %1018 = vmatpush.msra.mxu0 0.0
    %1019 = vmatpush.msra.mxu0 0.0
    %1020 = vmatpush.msra.mxu0 0.0
    %1021 = vmatpush.msra.mxu0 0.0
    %1022 = vmatpush.msra.mxu0 0.0
    %1023 = vmatpush.msra.mxu0 0.0
    %1024 = vmatpush.msra.mxu0 %v1007
    %1025 = vmatpush.msra.mxu0 %v1006
    %1026 = vmatmul.f32.gmra.mxu0 %v1008
    %v1027 = vpop.f32.mrf.mxu0
    %v1028 = vadd.f32 0.0, %v1027
    %1029 = vdwg.mxu0
    %v1030 = vadd.f32 %v1005, %v1028
    %v1031 = vxor.u32 %v1030, 2147483648
    %v1032 = vmul.f32 %v1031, 1.442695
    %v1033 = vpow.pop %v1032
    %v1034 = vadd.f32 %v1033, 1.0
    %v1035 = vrcp.pop %v1034
    %v1036 = vmul.f32 %v1034, %v1035
    %v1037 = vsub.f32 1.0, %v1036
    %v1038 = vmul.f32 %v1035, %v1037
    %v1039 = vadd.f32 %v1035, %v1038
    %vm1040 = vweird.f32 %v1034
    %vm1041 = vweird.f32 %v1035
    %vm1042 = vmor %vm1040, %vm1041
    %v1043 = vsel %vm1042, %v1035, %v1039
    %v1044 = vand.u32 2147483647, %v1034
    %vm1045 = vcmp.eq.f32.partialorder %v1044, 8.507059e+37
    %v1046 = vand.u32 %v1034, 2147483648
    %v1047 = vor.u32 1.1754944e-38, %v1046
    %v1048 = vsel %vm1045, %v1047, %v1043
    %v1049 = vmul.f32 1.0, %v1048
    %v1050 = vtanh.pop %v1030
    %v1051 = vmul.f32 %v1049, %v991
    %1053 = vrot.lane.b32.xlu0 %v1050, 96
    %v1054 = vpop.permute.xlu0 %1053
    %v1056 = vmul.f32 %v1049, %v1054
    %1058 = vrot.lane.b32.xlu0 %v1056, 16
    %v1059 = vpop.permute.xlu0 %1058
    %v1061 = vadd.f32 %v1051, %v1059
    %v1062 = vtanh.pop %v1061
    %1064 = vrot.lane.b32.xlu0 %v1062, 32
    %v1065 = vpop.permute.xlu0 %1064
    %v1067 = vmul.f32 %v1049, %v1065
    %1069 = vrot.lane.b32.xlu0 %v1067, 80
    %v1070 = vpop.permute.xlu0 %1069
    %s1072 = scalar_lea.vmem %s7, 24
    %1073 = vst.msk [vmem:[%s1072] sm:$0xff] %vm56, %v1070
    %s1074 = scalar_lea.vmem [#allocation4], 32
    %v1075 = vld [vmem:[%s1074] sm:$0xff]
    %v1076 = vld [vmem:[#allocation5] sm:$0xff]
    %v1077 = vld [vmem:[#allocation5 + $0x8] sm:$0xff]
    %v1078 = vsel %vm56, %v1070, 0
    %1080 = vmatpush.msra.mxu0 0.0
    %1081 = vmatpush.msra.mxu0 0.0
    %1082 = vmatpush.msra.mxu0 0.0
    %1083 = vmatpush.msra.mxu0 0.0
    %1084 = vmatpush.msra.mxu0 0.0
    %1085 = vmatpush.msra.mxu0 0.0
    %1086 = vmatpush.msra.mxu0 0.0
    %1087 = vmatpush.msra.mxu0 0.0
    %1088 = vmatpush.msra.mxu0 0.0
    %1089 = vmatpush.msra.mxu0 0.0
    %1090 = vmatpush.msra.mxu0 0.0
    %1091 = vmatpush.msra.mxu0 0.0
    %1092 = vmatpush.msra.mxu0 0.0
    %1093 = vmatpush.msra.mxu0 0.0
    %1094 = vmatpush.msra.mxu0 %v1077
    %1095 = vmatpush.msra.mxu0 %v1076
    %1096 = vmatmul.f32.gmra.mxu0 %v1078
    %v1097 = vpop.f32.mrf.mxu0
    %v1098 = vadd.f32 0.0, %v1097
    %1099 = vdwg.mxu0
    %v1100 = vadd.f32 %v1075, %v1098
    %v1101 = vxor.u32 %v1100, 2147483648
    %v1102 = vmul.f32 %v1101, 1.442695
    %v1103 = vpow.pop %v1102
    %v1104 = vadd.f32 %v1103, 1.0
    %v1105 = vrcp.pop %v1104
    %v1106 = vmul.f32 %v1104, %v1105
    %v1107 = vsub.f32 1.0, %v1106
    %v1108 = vmul.f32 %v1105, %v1107
    %v1109 = vadd.f32 %v1105, %v1108
    %vm1110 = vweird.f32 %v1104
    %vm1111 = vweird.f32 %v1105
    %vm1112 = vmor %vm1110, %vm1111
    %v1113 = vsel %vm1112, %v1105, %v1109
    %v1114 = vand.u32 2147483647, %v1104
    %vm1115 = vcmp.eq.f32.partialorder %v1114, 8.507059e+37
    %v1116 = vand.u32 %v1104, 2147483648
    %v1117 = vor.u32 1.1754944e-38, %v1116
    %v1118 = vsel %vm1115, %v1117, %v1113
    %v1119 = vmul.f32 1.0, %v1118
    %v1120 = vtanh.pop %v1100
    %v1121 = vmul.f32 %v1119, %v1061
    %1123 = vrot.lane.b32.xlu0 %v1120, 96
    %v1124 = vpop.permute.xlu0 %1123
    %v1126 = vmul.f32 %v1119, %v1124
    %1128 = vrot.lane.b32.xlu0 %v1126, 16
    %v1129 = vpop.permute.xlu0 %1128
    %v1131 = vadd.f32 %v1121, %v1129
    %v1132 = vtanh.pop %v1131
    %1134 = vrot.lane.b32.xlu0 %v1132, 32
    %v1135 = vpop.permute.xlu0 %1134
    %v1137 = vmul.f32 %v1119, %v1135
    %1139 = vrot.lane.b32.xlu0 %v1137, 80
    %v1140 = vpop.permute.xlu0 %1139
    %s1142 = scalar_lea.vmem %s7, 32
    %1143 = vst.msk [vmem:[%s1142] sm:$0xff] %vm56, %v1140
    %s1144 = scalar_lea.vmem [#allocation4], 40
    %v1145 = vld [vmem:[%s1144] sm:$0xff]
    %v1146 = vld [vmem:[#allocation5] sm:$0xff]
    %v1147 = vld [vmem:[#allocation5 + $0x8] sm:$0xff]
    %v1148 = vsel %vm56, %v1140, 0
    %1150 = vmatpush.msra.mxu0 0.0
    %1151 = vmatpush.msra.mxu0 0.0
    %1152 = vmatpush.msra.mxu0 0.0
    %1153 = vmatpush.msra.mxu0 0.0
    %1154 = vmatpush.msra.mxu0 0.0
    %1155 = vmatpush.msra.mxu0 0.0
    %1156 = vmatpush.msra.mxu0 0.0
    %1157 = vmatpush.msra.mxu0 0.0
    %1158 = vmatpush.msra.mxu0 0.0
    %1159 = vmatpush.msra.mxu0 0.0
    %1160 = vmatpush.msra.mxu0 0.0
    %1161 = vmatpush.msra.mxu0 0.0
    %1162 = vmatpush.msra.mxu0 0.0
    %1163 = vmatpush.msra.mxu0 0.0
    %1164 = vmatpush.msra.mxu0 %v1147
    %1165 = vmatpush.msra.mxu0 %v1146
    %1166 = vmatmul.f32.gmra.mxu0 %v1148
    %v1167 = vpop.f32.mrf.mxu0
    %v1168 = vadd.f32 0.0, %v1167
    %1169 = vdwg.mxu0
    %v1170 = vadd.f32 %v1145, %v1168
    %v1171 = vxor.u32 %v1170, 2147483648
    %v1172 = vmul.f32 %v1171, 1.442695
    %v1173 = vpow.pop %v1172
    %v1174 = vadd.f32 %v1173, 1.0
    %v1175 = vrcp.pop %v1174
    %v1176 = vmul.f32 %v1174, %v1175
    %v1177 = vsub.f32 1.0, %v1176
    %v1178 = vmul.f32 %v1175, %v1177
    %v1179 = vadd.f32 %v1175, %v1178
    %vm1180 = vweird.f32 %v1174
    %vm1181 = vweird.f32 %v1175
    %vm1182 = vmor %vm1180, %vm1181
    %v1183 = vsel %vm1182, %v1175, %v1179
    %v1184 = vand.u32 2147483647, %v1174
    %vm1185 = vcmp.eq.f32.partialorder %v1184, 8.507059e+37
    %v1186 = vand.u32 %v1174, 2147483648
    %v1187 = vor.u32 1.1754944e-38, %v1186
    %v1188 = vsel %vm1185, %v1187, %v1183
    %v1189 = vmul.f32 1.0, %v1188
    %v1190 = vtanh.pop %v1170
    %v1191 = vmul.f32 %v1189, %v1131
    %1193 = vrot.lane.b32.xlu0 %v1190, 96
    %v1194 = vpop.permute.xlu0 %1193
    %v1196 = vmul.f32 %v1189, %v1194
    %1198 = vrot.lane.b32.xlu0 %v1196, 16
    %v1199 = vpop.permute.xlu0 %1198
    %v1201 = vadd.f32 %v1191, %v1199
    %v1202 = vtanh.pop %v1201
    %1204 = vrot.lane.b32.xlu0 %v1202, 32
    %v1205 = vpop.permute.xlu0 %1204
    %v1207 = vmul.f32 %v1189, %v1205
    %1209 = vrot.lane.b32.xlu0 %v1207, 80
    %v1210 = vpop.permute.xlu0 %1209
    %s1212 = scalar_lea.vmem %s7, 40
    %1213 = vst.msk [vmem:[%s1212] sm:$0xff] %vm56, %v1210
    %s1214 = scalar_lea.vmem [#allocation4], 48
    %v1215 = vld [vmem:[%s1214] sm:$0xff]
    %v1216 = vld [vmem:[#allocation5] sm:$0xff]
    %v1217 = vld [vmem:[#allocation5 + $0x8] sm:$0xff]
    %v1218 = vsel %vm56, %v1210, 0
    %1220 = vmatpush.msra.mxu0 0.0
    %1221 = vmatpush.msra.mxu0 0.0
    %1222 = vmatpush.msra.mxu0 0.0
    %1223 = vmatpush.msra.mxu0 0.0
    %1224 = vmatpush.msra.mxu0 0.0
    %1225 = vmatpush.msra.mxu0 0.0
    %1226 = vmatpush.msra.mxu0 0.0
    %1227 = vmatpush.msra.mxu0 0.0
    %1228 = vmatpush.msra.mxu0 0.0
    %1229 = vmatpush.msra.mxu0 0.0
    %1230 = vmatpush.msra.mxu0 0.0
    %1231 = vmatpush.msra.mxu0 0.0
    %1232 = vmatpush.msra.mxu0 0.0
    %1233 = vmatpush.msra.mxu0 0.0
    %1234 = vmatpush.msra.mxu0 %v1217
    %1235 = vmatpush.msra.mxu0 %v1216
    %1236 = vmatmul.f32.gmra.mxu0 %v1218
    %v1237 = vpop.f32.mrf.mxu0
    %v1238 = vadd.f32 0.0, %v1237
    %1239 = vdwg.mxu0
    %v1240 = vadd.f32 %v1215, %v1238
    %v1241 = vxor.u32 %v1240, 2147483648
    %v1242 = vmul.f32 %v1241, 1.442695
    %v1243 = vpow.pop %v1242
    %v1244 = vadd.f32 %v1243, 1.0
    %v1245 = vrcp.pop %v1244
    %v1246 = vmul.f32 %v1244, %v1245
    %v1247 = vsub.f32 1.0, %v1246
    %v1248 = vmul.f32 %v1245, %v1247
    %v1249 = vadd.f32 %v1245, %v1248
    %vm1250 = vweird.f32 %v1244
    %vm1251 = vweird.f32 %v1245
    %vm1252 = vmor %vm1250, %vm1251
    %v1253 = vsel %vm1252, %v1245, %v1249
    %v1254 = vand.u32 2147483647, %v1244
    %vm1255 = vcmp.eq.f32.partialorder %v1254, 8.507059e+37
    %v1256 = vand.u32 %v1244, 2147483648
    %v1257 = vor.u32 1.1754944e-38, %v1256
    %v1258 = vsel %vm1255, %v1257, %v1253
    %v1259 = vmul.f32 1.0, %v1258
    %v1260 = vtanh.pop %v1240
    %v1261 = vmul.f32 %v1259, %v1201
    %1263 = vrot.lane.b32.xlu0 %v1260, 96
    %v1264 = vpop.permute.xlu0 %1263
    %v1266 = vmul.f32 %v1259, %v1264
    %1268 = vrot.lane.b32.xlu0 %v1266, 16
    %v1269 = vpop.permute.xlu0 %1268
    %v1271 = vadd.f32 %v1261, %v1269
    %v1272 = vtanh.pop %v1271
    %1274 = vrot.lane.b32.xlu0 %v1272, 32
    %v1275 = vpop.permute.xlu0 %1274
    %v1277 = vmul.f32 %v1259, %v1275
    %1279 = vrot.lane.b32.xlu0 %v1277, 80
    %v1280 = vpop.permute.xlu0 %1279
    %s1282 = scalar_lea.vmem %s7, 48
    %1283 = vst.msk [vmem:[%s1282] sm:$0xff] %vm56, %v1280
    %s1284 = scalar_lea.vmem [#allocation4], 56
    %v1285 = vld [vmem:[%s1284] sm:$0xff]
    %v1286 = vld [vmem:[#allocation5] sm:$0xff]
    %v1287 = vld [vmem:[#allocation5 + $0x8] sm:$0xff]
    %v1288 = vsel %vm56, %v1280, 0
    %1290 = vmatpush.msra.mxu0 0.0
    %1291 = vmatpush.msra.mxu0 0.0
    %1292 = vmatpush.msra.mxu0 0.0
    %1293 = vmatpush.msra.mxu0 0.0
    %1294 = vmatpush.msra.mxu0 0.0
    %1295 = vmatpush.msra.mxu0 0.0
    %1296 = vmatpush.msra.mxu0 0.0
    %1297 = vmatpush.msra.mxu0 0.0
    %1298 = vmatpush.msra.mxu0 0.0
    %1299 = vmatpush.msra.mxu0 0.0
    %1300 = vmatpush.msra.mxu0 0.0
    %1301 = vmatpush.msra.mxu0 0.0
    %1302 = vmatpush.msra.mxu0 0.0
    %1303 = vmatpush.msra.mxu0 0.0
    %1304 = vmatpush.msra.mxu0 %v1287
    %1305 = vmatpush.msra.mxu0 %v1286
    %1306 = vmatmul.f32.gmra.mxu0 %v1288
    %v1307 = vpop.f32.mrf.mxu0
    %v1308 = vadd.f32 0.0, %v1307
    %1309 = vdwg.mxu0
    %v1310 = vadd.f32 %v1285, %v1308
    %v1311 = vxor.u32 %v1310, 2147483648
    %v1312 = vmul.f32 %v1311, 1.442695
    %v1313 = vpow.pop %v1312
    %v1314 = vadd.f32 %v1313, 1.0
    %v1315 = vrcp.pop %v1314
    %v1316 = vmul.f32 %v1314, %v1315
    %v1317 = vsub.f32 1.0, %v1316
    %v1318 = vmul.f32 %v1315, %v1317
    %v1319 = vadd.f32 %v1315, %v1318
    %vm1320 = vweird.f32 %v1314
    %vm1321 = vweird.f32 %v1315
    %vm1322 = vmor %vm1320, %vm1321
    %v1323 = vsel %vm1322, %v1315, %v1319
    %v1324 = vand.u32 2147483647, %v1314
    %vm1325 = vcmp.eq.f32.partialorder %v1324, 8.507059e+37
    %v1326 = vand.u32 %v1314, 2147483648
    %v1327 = vor.u32 1.1754944e-38, %v1326
    %v1328 = vsel %vm1325, %v1327, %v1323
    %v1329 = vmul.f32 1.0, %v1328
    %v1330 = vtanh.pop %v1310
    %v1331 = vmul.f32 %v1329, %v1271
    %1333 = vrot.lane.b32.xlu0 %v1330, 96
    %v1334 = vpop.permute.xlu0 %1333
    %v1336 = vmul.f32 %v1329, %v1334
    %1338 = vrot.lane.b32.xlu0 %v1336, 16
    %v1339 = vpop.permute.xlu0 %1338
    %v1341 = vadd.f32 %v1331, %v1339
    %v1342 = vtanh.pop %v1341
    %1344 = vrot.lane.b32.xlu0 %v1342, 32
    %v1345 = vpop.permute.xlu0 %1344
    %v1347 = vmul.f32 %v1329, %v1345
    %1349 = vrot.lane.b32.xlu0 %v1347, 80
    %v1350 = vpop.permute.xlu0 %1349
    %s1352 = scalar_lea.vmem %s7, 56
    %1353 = vst.msk [vmem:[%s1352] sm:$0xff] %vm56, %v1350
    // Predicated region
    $region34: #{tpu_custom_call.1} parent=1 // pred_check
      _
    $region35: #{tpu_custom_call.1} parent=1 // pred_check_branch
      %1355 = sbr.rel (0) target = $region37
    $region36: #{tpu_custom_call.1} parent=1 // pred_region
      _
    $region37: #{tpu_custom_call.1} parent=1 // pred_fallthru
      _
    // Predicated region
    $region38: #{tpu_custom_call.1} parent=1 // pred_check
      _
    $region39: #{tpu_custom_call.1} parent=1 // pred_check_branch
      %1357 = sbr.rel (0) target = $region41
    $region40: #{tpu_custom_call.1} parent=1 // pred_region
      _
    $region41: #{tpu_custom_call.1} parent=1 // pred_fallthru
      _
    %1358 = vsyncpa [#allocation6], 1

</llo_original>
